<compile_context>
chip_gen: v6e
topology: v6e:2x2x1
jax: 0.10.0
libtpu: 0.0.40
codegen_flags: <defaults>
</compile_context>

<pallas_src>
import functools

import jax
import jax.numpy as jnp
from jax.experimental import pallas as pl
from jax.experimental.pallas import tpu as pltpu

NEG_SLOPE = 0.01
EPS = 1e-5


def _lrelu(v):
    return jnp.where(v >= 0, v, NEG_SLOPE * v)


def _csa_kernel(x_ref, masks_ref, w_ref, colp_ref, w1_ref, b1_ref, w2r_ref,
                b2r_ref, o_ref, xs_ref, *, deltas):
    C, S = o_ref.shape
    inv_s = 1.0 / S

    conv_b = colp_ref[:, 0:1]                                    # (C, 1)
    gamma = colp_ref[:, 1:2]                                     # (C, 1)
    beta = colp_ref[:, 2:3]                                      # (C, 1)

    # ---- build the 27-tap stack in VMEM from the single (C, S) x tile ----
    x = x_ref[...].astype(jnp.float32)                           # (C, S)
    masks = masks_ref[...]                                       # (27, S) {0,1}

    def lane_shift(v, delta):
        # out[:, s] = v[:, (s + delta) mod S]; wrapped/spilled voxels are
        # exactly the padding=1 zeros and get killed by the boundary mask.
        d = delta % S
        if d == 0:
            return v
        return jnp.concatenate([v[:, d:], v[:, :d]], axis=1)

    for k, delta in enumerate(deltas):
        xs_ref[k * C:(k + 1) * C, :] = lane_shift(x, delta) * masks[k:k + 1, :]

    # ---- 3x3x3 conv: ONE fused (C, 27C) @ (27C, S) bf16 MXU matmul ----
    xs = xs_ref[...].astype(w_ref.dtype)
    conv = jnp.dot(w_ref[...], xs,
                   preferred_element_type=jnp.float32) + conv_b  # (C, S) f32

    # ---- inner InstanceNorm3d (affine=False) + LeakyReLU (fused sum/sumsq) ----
    mu = jnp.sum(conv, axis=1, keepdims=True) * inv_s
    ex2 = jnp.sum(conv * conv, axis=1, keepdims=True) * inv_s
    var = ex2 - mu * mu
    y = _lrelu((conv - mu) * jax.lax.rsqrt(var + EPS))           # (C, S)

    # ---- channel-order MLP: avgpool -> Linear -> LReLU -> Linear ----
    # (Sigmoid is monotone and only feeds an argsort, so ranking the logits
    #  gives the identical channel order.)
    s_col = jnp.sum(y, axis=1, keepdims=True) * inv_s            # (C, 1)
    h = _lrelu(jnp.sum(s_col * w1_ref[...], axis=0, keepdims=True)
               + b1_ref[...])                                    # (1, Chp)
    t_row = jnp.dot(h, w2r_ref[...],
                    preferred_element_type=jnp.float32) + b2r_ref[...]  # (1, C)

    # ---- descending-argsort ranks via one (C,C) pairwise comparison ----
    kk = jax.lax.broadcasted_iota(jnp.int32, (C, C), 0)
    jj = jax.lax.broadcasted_iota(jnp.int32, (C, C), 1)
    t_mat = jnp.broadcast_to(t_row, (C, C))                      # t_mat[k,j] = t[j]
    # Diagonal as a column via a tiny MXU dot: t_col[k] = t[k].  Same floats in
    # both orientations -> the comparator is an exact strict total order
    # (self-compare fails the k<j tie-break), so `rank` is a valid permutation.
    t_col = jnp.dot(jnp.where(kk == jj, t_mat, 0.0),
                    jnp.ones((C, 1), jnp.float32),
                    preferred_element_type=jnp.float32)          # (C, 1)
    beats = jnp.logical_or(t_col > t_mat,
                           jnp.logical_and(t_col == t_mat, kk < jj))
    rank = jnp.sum(beats.astype(jnp.float32), axis=0,
                   keepdims=True)                                # (1, C)
    # perm[i, j] = 1 iff channel j is the i-th largest (rank[j] == i)
    perm = (kk.astype(jnp.float32) == rank).astype(jnp.float32)  # (C, C)

    # ---- channel exchange (single MXU matmul) + residual ----
    z = y + jnp.dot(perm, y, preferred_element_type=jnp.float32)  # (C, S)

    # ---- outer InstanceNorm3d(affine=True) + LeakyReLU, fused stats,
    #      single lane-dense full-tile store ----
    mu2 = jnp.sum(z, axis=1, keepdims=True) * inv_s
    ez2 = jnp.sum(z * z, axis=1, keepdims=True) * inv_s
    var2 = ez2 - mu2 * mu2
    o_ref[...] = _lrelu((z - mu2) * jax.lax.rsqrt(var2 + EPS) * gamma + beta)


def csa_dropout_norm_nonlin(x, params, *, compute_dtype=jnp.bfloat16):
    """x: (B, C, D, H, W) float32 (NCDHW, as in PyTorch)."""
    B, C, D, H, W = x.shape
    S = D * H * W
    Ch = params["w1"].shape[1]
    Chp = max(8, -(-Ch // 8) * 8)        # hidden dim padded to a multiple of 8

    # Activation shipped ONCE, lane-dense and bf16 (no 27x im2col in HBM).
    x_flat = x.reshape(B, C, S).astype(compute_dtype)

    # Tap offsets and boundary-validity masks (tiny host constants, shared
    # across the batch grid).  delta = od*H*W + oh*W + ow for offsets in
    # {-1,0,1}^3; mask zeroes neighbours that fall outside the volume (i.e.
    # the padding=1 zeros of the PyTorch conv).
    idx = jnp.arange(S, dtype=jnp.int32)
    d_idx = idx // (H * W)
    h_idx = (idx // W) % H
    w_idx = idx % W
    offsets = [(od, oh, ow) for od in (-1, 0, 1)
               for oh in (-1, 0, 1) for ow in (-1, 0, 1)]
    deltas = tuple(od * H * W + oh * W + ow for od, oh, ow in offsets)
    masks = jnp.stack(
        [((d_idx + od >= 0) & (d_idx + od < D) &
          (h_idx + oh >= 0) & (h_idx + oh < H) &
          (w_idx + ow >= 0) & (w_idx + ow < W)).astype(jnp.float32)
         for od, oh, ow in offsets], axis=0)                      # (27, S)

    # Conv weights flattened to match the tap stacking order: (C_out, 27*C_in).
    w_flat = params["conv_w"].reshape(C, C, 27).transpose(0, 2, 1) \
                             .reshape(C, 27 * C).astype(compute_dtype)

    # Pack the three per-channel column params into one lane-dense slab.
    colp = jnp.stack([params["conv_b"], params["gamma"], params["beta"]],
                     axis=1)                                      # (C, 3) f32

    # MLP params, hidden dim zero-padded to Chp (padded lanes stay exactly 0).
    w1 = jnp.zeros((C, Chp), jnp.float32).at[:, :Ch].set(params["w1"])
    b1 = jnp.zeros((1, Chp), jnp.float32).at[:, :Ch].set(params["b1"][None, :])
    w2r = jnp.zeros((Chp, C), jnp.float32).at[:Ch, :].set(params["w2t"].T)
    b2r = params["b2"].reshape(1, C)

    kernel = functools.partial(_csa_kernel, deltas=deltas)

    out_flat = pl.pallas_call(
        kernel,
        out_shape=jax.ShapeDtypeStruct((B, C, S), jnp.float32),
        grid=(B,),
        in_specs=[
            pl.BlockSpec((None, C, S), lambda b: (b, 0, 0)),
            pl.BlockSpec((27, S), lambda b: (0, 0)),
            pl.BlockSpec((C, 27 * C), lambda b: (0, 0)),
            pl.BlockSpec((C, 3), lambda b: (0, 0)),
            pl.BlockSpec((C, Chp), lambda b: (0, 0)),
            pl.BlockSpec((1, Chp), lambda b: (0, 0)),
            pl.BlockSpec((Chp, C), lambda b: (0, 0)),
            pl.BlockSpec((1, C), lambda b: (0, 0)),
        ],
        out_specs=pl.BlockSpec((None, C, S), lambda b: (b, 0, 0)),
        scratch_shapes=[pltpu.VMEM((27 * C, S), jnp.float32)],   # tap stack
        compiler_params=pltpu.CompilerParams(
            dimension_semantics=("parallel",),
            vmem_limit_bytes=64 * 1024 * 1024),
    )(x_flat, masks, w_flat, colp, w1, b1, w2r, b2r)
    return out_flat.reshape(B, C, D, H, W)


def init_params(key, C, ratio=0.25):
    # Deterministic synthetic init (shapes follow the module's __init__).
    Ch = int(C * ratio)
    ks = jax.random.split(key, 8)
    s = 0.1
    return {
        "conv_w": s * jax.random.normal(ks[0], (C, C, 3, 3, 3), jnp.float32),
        "conv_b": s * jax.random.normal(ks[1], (C,), jnp.float32),
        "w1": jax.random.normal(ks[2], (C, Ch), jnp.float32),   # Linear1 (C->Ch)
        "b1": s * jax.random.normal(ks[3], (Ch,), jnp.float32),
        "w2t": jax.random.normal(ks[4], (C, Ch), jnp.float32),  # Linear2^T (Ch->C)
        "b2": s * jax.random.normal(ks[5], (C,), jnp.float32),
        "gamma": 1.0 + s * jax.random.normal(ks[6], (C,), jnp.float32),
        "beta": s * jax.random.normal(ks[7], (C,), jnp.float32),
    }


def reference(x, params):
    # Pure-JAX f32 reference mirroring the PyTorch forward.
    conv = jax.lax.conv_general_dilated(
        x, params["conv_w"], window_strides=(1, 1, 1), padding="SAME",
        dimension_numbers=("NCDHW", "OIDHW", "NCDHW"))
    conv = conv + params["conv_b"][None, :, None, None, None]
    mu = conv.mean(axis=(2, 3, 4), keepdims=True)
    var = ((conv - mu) ** 2).mean(axis=(2, 3, 4), keepdims=True)
    y = _lrelu((conv - mu) / jnp.sqrt(var + EPS))
    s = y.mean(axis=(2, 3, 4))                                  # (B, C)
    h = _lrelu(s @ params["w1"] + params["b1"])
    p = jax.nn.sigmoid(h @ params["w2t"].T + params["b2"])      # (B, C)
    order = jnp.argsort(-p, axis=1)                             # descending
    ex = jax.vmap(lambda yi, oi: yi[oi])(y, order)              # channel exchange
    z = y + ex
    mu2 = z.mean(axis=(2, 3, 4), keepdims=True)
    var2 = ((z - mu2) ** 2).mean(axis=(2, 3, 4), keepdims=True)
    out = (z - mu2) / jnp.sqrt(var2 + EPS)
    out = out * params["gamma"][None, :, None, None, None] \
        + params["beta"][None, :, None, None, None]
    return _lrelu(out)


if __name__ == "__main__":
    key = jax.random.PRNGKey(0)
    kx, kp = jax.random.split(key)
    B, C, D, H, W = 2, 8, 8, 8, 8
    x = jax.random.normal(kx, (B, C, D, H, W), jnp.float32)
    params = init_params(kp, C)

    out = jax.block_until_ready(csa_dropout_norm_nonlin(x, params))
    ref = jax.block_until_ready(reference(x, params))

    assert out.shape == (B, C, D, H, W)
    err = float(jnp.max(jnp.abs(out - ref)))
    # Conv operands are bf16 in the kernel (f32 in the reference): expected
    # max abs deviation ~1e-2 after the two instance norms; 8e-2 still catches
    # any real bug (rank flips / wrong taps give O(1) errors).
    assert err < 8e-2, f"max abs err vs reference: {err}"
    print("KERNEL_OK")
</pallas_src>

<mosaic_0001>
module attributes {stable_mosaic.version = 11 : i64} {
  func.func @_csa_kernel(%arg0: i32, %arg1: memref<1x8x512xbf16, #tpu.memory_space<vmem>>, %arg2: memref<27x512xf32, #tpu.memory_space<vmem>>, %arg3: memref<8x216xbf16, #tpu.memory_space<vmem>>, %arg4: memref<8x3xf32, #tpu.memory_space<vmem>>, %arg5: memref<8x8xf32, #tpu.memory_space<vmem>>, %arg6: memref<1x8xf32, #tpu.memory_space<vmem>>, %arg7: memref<8x8xf32, #tpu.memory_space<vmem>>, %arg8: memref<1x8xf32, #tpu.memory_space<vmem>>, %arg9: memref<1x8x512xf32, #tpu.memory_space<vmem>>, %arg10: memref<216x512xf32, #tpu.memory_space<vmem>>) attributes {dimension_semantics = [#tpu.dimension_semantics<parallel>], iteration_bounds = array<i64: 2>, scalar_prefetch = 0 : i64, scratch_operands = 1 : i64, tpu.core_type = #tpu.core_type<tc>, window_params = [{transform_indices = @transform_0, window_bounds = array<i64: 1, 8, 512>}, {pipeline_mode = #tpu.pipeline_mode<synchronous>, transform_indices = @transform_1, window_bounds = array<i64: 27, 512>}, {pipeline_mode = #tpu.pipeline_mode<synchronous>, transform_indices = @transform_2, window_bounds = array<i64: 8, 216>}, {pipeline_mode = #tpu.pipeline_mode<synchronous>, transform_indices = @transform_3, window_bounds = array<i64: 8, 3>}, {pipeline_mode = #tpu.pipeline_mode<synchronous>, transform_indices = @transform_4, window_bounds = array<i64: 8, 8>}, {pipeline_mode = #tpu.pipeline_mode<synchronous>, transform_indices = @transform_5, window_bounds = array<i64: 1, 8>}, {pipeline_mode = #tpu.pipeline_mode<synchronous>, transform_indices = @transform_6, window_bounds = array<i64: 8, 8>}, {pipeline_mode = #tpu.pipeline_mode<synchronous>, transform_indices = @transform_7, window_bounds = array<i64: 1, 8>}, {transform_indices = @transform_8, window_bounds = array<i64: 1, 8, 512>}]} {
    %c0 = arith.constant 0 : index
    %c0_0 = arith.constant 0 : index
    %0 = vector.load %arg4[%c0, %c0_0] : memref<8x3xf32, #tpu.memory_space<vmem>>, vector<8x1xf32>
    %c0_1 = arith.constant 0 : index
    %c1 = arith.constant 1 : index
    %1 = vector.load %arg4[%c0_1, %c1] : memref<8x3xf32, #tpu.memory_space<vmem>>, vector<8x1xf32>
    %c0_2 = arith.constant 0 : index
    %c2 = arith.constant 2 : index
    %2 = vector.load %arg4[%c0_2, %c2] : memref<8x3xf32, #tpu.memory_space<vmem>>, vector<8x1xf32>
    %c0_3 = arith.constant 0 : index
    %c0_4 = arith.constant 0 : index
    %c0_5 = arith.constant 0 : index
    %3 = vector.load %arg1[%c0_3, %c0_4, %c0_5] : memref<1x8x512xbf16, #tpu.memory_space<vmem>>, vector<1x8x512xbf16>
    %4 = vector.shape_cast %3 : vector<1x8x512xbf16> to vector<8x512xbf16>
    %5 = arith.extf %4 : vector<8x512xbf16> to vector<8x512xf32>
    %c0_6 = arith.constant 0 : index
    %c0_7 = arith.constant 0 : index
    %6 = vector.load %arg2[%c0_6, %c0_7] : memref<27x512xf32, #tpu.memory_space<vmem>>, vector<27x512xf32>
    %7 = vector.extract_strided_slice %5 {offsets = [0, 439], sizes = [8, 73], strides = [1, 1]} : vector<8x512xf32> to vector<8x73xf32>
    %8 = vector.extract_strided_slice %5 {offsets = [0, 0], sizes = [8, 439], strides = [1, 1]} : vector<8x512xf32> to vector<8x439xf32>
    %9 = tpu.concatenate %7, %8 in 1 : vector<8x73xf32>, vector<8x439xf32> -> vector<8x512xf32>
    %10 = vector.extract_strided_slice %6 {offsets = [0, 0], sizes = [1, 512], strides = [1, 1]} : vector<27x512xf32> to vector<1x512xf32>
    %11 = vector.broadcast %10 : vector<1x512xf32> to vector<8x512xf32>
    %12 = arith.mulf %9, %11 : vector<8x512xf32>
    %c0_8 = arith.constant 0 : index
    %c0_9 = arith.constant 0 : index
    %13 = vector.load %arg10[%c0_8, %c0_9] : memref<216x512xf32, #tpu.memory_space<vmem>>, vector<8x512xf32>
    tpu.vector_store %arg10[%c0_8, %c0_9], %12 {strides = array<i32>} : memref<216x512xf32, #tpu.memory_space<vmem>>, vector<8x512xf32>,
    %14 = vector.extract_strided_slice %5 {offsets = [0, 440], sizes = [8, 72], strides = [1, 1]} : vector<8x512xf32> to vector<8x72xf32>
    %15 = vector.extract_strided_slice %5 {offsets = [0, 0], sizes = [8, 440], strides = [1, 1]} : vector<8x512xf32> to vector<8x440xf32>
    %16 = tpu.concatenate %14, %15 in 1 : vector<8x72xf32>, vector<8x440xf32> -> vector<8x512xf32>
    %17 = vector.extract_strided_slice %6 {offsets = [1, 0], sizes = [1, 512], strides = [1, 1]} : vector<27x512xf32> to vector<1x512xf32>
    %18 = vector.broadcast %17 : vector<1x512xf32> to vector<8x512xf32>
    %19 = arith.mulf %16, %18 : vector<8x512xf32>
    %c8 = arith.constant 8 : index
    %c0_10 = arith.constant 0 : index
    %20 = vector.load %arg10[%c8, %c0_10] : memref<216x512xf32, #tpu.memory_space<vmem>>, vector<8x512xf32>
    tpu.vector_store %arg10[%c8, %c0_10], %19 {strides = array<i32>} : memref<216x512xf32, #tpu.memory_space<vmem>>, vector<8x512xf32>,
    %21 = vector.extract_strided_slice %5 {offsets = [0, 441], sizes = [8, 71], strides = [1, 1]} : vector<8x512xf32> to vector<8x71xf32>
    %22 = vector.extract_strided_slice %5 {offsets = [0, 0], sizes = [8, 441], strides = [1, 1]} : vector<8x512xf32> to vector<8x441xf32>
    %23 = tpu.concatenate %21, %22 in 1 : vector<8x71xf32>, vector<8x441xf32> -> vector<8x512xf32>
    %24 = vector.extract_strided_slice %6 {offsets = [2, 0], sizes = [1, 512], strides = [1, 1]} : vector<27x512xf32> to vector<1x512xf32>
    %25 = vector.broadcast %24 : vector<1x512xf32> to vector<8x512xf32>
    %26 = arith.mulf %23, %25 : vector<8x512xf32>
    %c16 = arith.constant 16 : index
    %c0_11 = arith.constant 0 : index
    %27 = vector.load %arg10[%c16, %c0_11] : memref<216x512xf32, #tpu.memory_space<vmem>>, vector<8x512xf32>
    tpu.vector_store %arg10[%c16, %c0_11], %26 {strides = array<i32>} : memref<216x512xf32, #tpu.memory_space<vmem>>, vector<8x512xf32>,
    %28 = vector.extract_strided_slice %5 {offsets = [0, 447], sizes = [8, 65], strides = [1, 1]} : vector<8x512xf32> to vector<8x65xf32>
    %29 = vector.extract_strided_slice %5 {offsets = [0, 0], sizes = [8, 447], strides = [1, 1]} : vector<8x512xf32> to vector<8x447xf32>
    %30 = tpu.concatenate %28, %29 in 1 : vector<8x65xf32>, vector<8x447xf32> -> vector<8x512xf32>
    %31 = vector.extract_strided_slice %6 {offsets = [3, 0], sizes = [1, 512], strides = [1, 1]} : vector<27x512xf32> to vector<1x512xf32>
    %32 = vector.broadcast %31 : vector<1x512xf32> to vector<8x512xf32>
    %33 = arith.mulf %30, %32 : vector<8x512xf32>
    %c24 = arith.constant 24 : index
    %c0_12 = arith.constant 0 : index
    %34 = vector.load %arg10[%c24, %c0_12] : memref<216x512xf32, #tpu.memory_space<vmem>>, vector<8x512xf32>
    tpu.vector_store %arg10[%c24, %c0_12], %33 {strides = array<i32>} : memref<216x512xf32, #tpu.memory_space<vmem>>, vector<8x512xf32>,
    %35 = vector.extract_strided_slice %5 {offsets = [0, 448], sizes = [8, 64], strides = [1, 1]} : vector<8x512xf32> to vector<8x64xf32>
    %36 = vector.extract_strided_slice %5 {offsets = [0, 0], sizes = [8, 448], strides = [1, 1]} : vector<8x512xf32> to vector<8x448xf32>
    %37 = tpu.concatenate %35, %36 in 1 : vector<8x64xf32>, vector<8x448xf32> -> vector<8x512xf32>
    %38 = vector.extract_strided_slice %6 {offsets = [4, 0], sizes = [1, 512], strides = [1, 1]} : vector<27x512xf32> to vector<1x512xf32>
    %39 = vector.broadcast %38 : vector<1x512xf32> to vector<8x512xf32>
    %40 = arith.mulf %37, %39 : vector<8x512xf32>
    %c32 = arith.constant 32 : index
    %c0_13 = arith.constant 0 : index
    %41 = vector.load %arg10[%c32, %c0_13] : memref<216x512xf32, #tpu.memory_space<vmem>>, vector<8x512xf32>
    tpu.vector_store %arg10[%c32, %c0_13], %40 {strides = array<i32>} : memref<216x512xf32, #tpu.memory_space<vmem>>, vector<8x512xf32>,
    %42 = vector.extract_strided_slice %5 {offsets = [0, 449], sizes = [8, 63], strides = [1, 1]} : vector<8x512xf32> to vector<8x63xf32>
    %43 = vector.extract_strided_slice %5 {offsets = [0, 0], sizes = [8, 449], strides = [1, 1]} : vector<8x512xf32> to vector<8x449xf32>
    %44 = tpu.concatenate %42, %43 in 1 : vector<8x63xf32>, vector<8x449xf32> -> vector<8x512xf32>
    %45 = vector.extract_strided_slice %6 {offsets = [5, 0], sizes = [1, 512], strides = [1, 1]} : vector<27x512xf32> to vector<1x512xf32>
    %46 = vector.broadcast %45 : vector<1x512xf32> to vector<8x512xf32>
    %47 = arith.mulf %44, %46 : vector<8x512xf32>
    %c40 = arith.constant 40 : index
    %c0_14 = arith.constant 0 : index
    %48 = vector.load %arg10[%c40, %c0_14] : memref<216x512xf32, #tpu.memory_space<vmem>>, vector<8x512xf32>
    tpu.vector_store %arg10[%c40, %c0_14], %47 {strides = array<i32>} : memref<216x512xf32, #tpu.memory_space<vmem>>, vector<8x512xf32>,
    %49 = vector.extract_strided_slice %5 {offsets = [0, 455], sizes = [8, 57], strides = [1, 1]} : vector<8x512xf32> to vector<8x57xf32>
    %50 = vector.extract_strided_slice %5 {offsets = [0, 0], sizes = [8, 455], strides = [1, 1]} : vector<8x512xf32> to vector<8x455xf32>
    %51 = tpu.concatenate %49, %50 in 1 : vector<8x57xf32>, vector<8x455xf32> -> vector<8x512xf32>
    %52 = vector.extract_strided_slice %6 {offsets = [6, 0], sizes = [1, 512], strides = [1, 1]} : vector<27x512xf32> to vector<1x512xf32>
    %53 = vector.broadcast %52 : vector<1x512xf32> to vector<8x512xf32>
    %54 = arith.mulf %51, %53 : vector<8x512xf32>
    %c48 = arith.constant 48 : index
    %c0_15 = arith.constant 0 : index
    %55 = vector.load %arg10[%c48, %c0_15] : memref<216x512xf32, #tpu.memory_space<vmem>>, vector<8x512xf32>
    tpu.vector_store %arg10[%c48, %c0_15], %54 {strides = array<i32>} : memref<216x512xf32, #tpu.memory_space<vmem>>, vector<8x512xf32>,
    %56 = vector.extract_strided_slice %5 {offsets = [0, 456], sizes = [8, 56], strides = [1, 1]} : vector<8x512xf32> to vector<8x56xf32>
    %57 = vector.extract_strided_slice %5 {offsets = [0, 0], sizes = [8, 456], strides = [1, 1]} : vector<8x512xf32> to vector<8x456xf32>
    %58 = tpu.concatenate %56, %57 in 1 : vector<8x56xf32>, vector<8x456xf32> -> vector<8x512xf32>
    %59 = vector.extract_strided_slice %6 {offsets = [7, 0], sizes = [1, 512], strides = [1, 1]} : vector<27x512xf32> to vector<1x512xf32>
    %60 = vector.broadcast %59 : vector<1x512xf32> to vector<8x512xf32>
    %61 = arith.mulf %58, %60 : vector<8x512xf32>
    %c56 = arith.constant 56 : index
    %c0_16 = arith.constant 0 : index
    %62 = vector.load %arg10[%c56, %c0_16] : memref<216x512xf32, #tpu.memory_space<vmem>>, vector<8x512xf32>
    tpu.vector_store %arg10[%c56, %c0_16], %61 {strides = array<i32>} : memref<216x512xf32, #tpu.memory_space<vmem>>, vector<8x512xf32>,
    %63 = vector.extract_strided_slice %5 {offsets = [0, 457], sizes = [8, 55], strides = [1, 1]} : vector<8x512xf32> to vector<8x55xf32>
    %64 = vector.extract_strided_slice %5 {offsets = [0, 0], sizes = [8, 457], strides = [1, 1]} : vector<8x512xf32> to vector<8x457xf32>
    %65 = tpu.concatenate %63, %64 in 1 : vector<8x55xf32>, vector<8x457xf32> -> vector<8x512xf32>
    %66 = vector.extract_strided_slice %6 {offsets = [8, 0], sizes = [1, 512], strides = [1, 1]} : vector<27x512xf32> to vector<1x512xf32>
    %67 = vector.broadcast %66 : vector<1x512xf32> to vector<8x512xf32>
    %68 = arith.mulf %65, %67 : vector<8x512xf32>
    %c64 = arith.constant 64 : index
    %c0_17 = arith.constant 0 : index
    %69 = vector.load %arg10[%c64, %c0_17] : memref<216x512xf32, #tpu.memory_space<vmem>>, vector<8x512xf32>
    tpu.vector_store %arg10[%c64, %c0_17], %68 {strides = array<i32>} : memref<216x512xf32, #tpu.memory_space<vmem>>, vector<8x512xf32>,
    %70 = vector.extract_strided_slice %5 {offsets = [0, 503], sizes = [8, 9], strides = [1, 1]} : vector<8x512xf32> to vector<8x9xf32>
    %71 = vector.extract_strided_slice %5 {offsets = [0, 0], sizes = [8, 503], strides = [1, 1]} : vector<8x512xf32> to vector<8x503xf32>
    %72 = tpu.concatenate %70, %71 in 1 : vector<8x9xf32>, vector<8x503xf32> -> vector<8x512xf32>
    %73 = vector.extract_strided_slice %6 {offsets = [9, 0], sizes = [1, 512], strides = [1, 1]} : vector<27x512xf32> to vector<1x512xf32>
    %74 = vector.broadcast %73 : vector<1x512xf32> to vector<8x512xf32>
    %75 = arith.mulf %72, %74 : vector<8x512xf32>
    %c72 = arith.constant 72 : index
    %c0_18 = arith.constant 0 : index
    %76 = vector.load %arg10[%c72, %c0_18] : memref<216x512xf32, #tpu.memory_space<vmem>>, vector<8x512xf32>
    tpu.vector_store %arg10[%c72, %c0_18], %75 {strides = array<i32>} : memref<216x512xf32, #tpu.memory_space<vmem>>, vector<8x512xf32>,
    %77 = vector.extract_strided_slice %5 {offsets = [0, 504], sizes = [8, 8], strides = [1, 1]} : vector<8x512xf32> to vector<8x8xf32>
    %78 = vector.extract_strided_slice %5 {offsets = [0, 0], sizes = [8, 504], strides = [1, 1]} : vector<8x512xf32> to vector<8x504xf32>
    %79 = tpu.concatenate %77, %78 in 1 : vector<8x8xf32>, vector<8x504xf32> -> vector<8x512xf32>
    %80 = vector.extract_strided_slice %6 {offsets = [10, 0], sizes = [1, 512], strides = [1, 1]} : vector<27x512xf32> to vector<1x512xf32>
    %81 = vector.broadcast %80 : vector<1x512xf32> to vector<8x512xf32>
    %82 = arith.mulf %79, %81 : vector<8x512xf32>
    %c80 = arith.constant 80 : index
    %c0_19 = arith.constant 0 : index
    %83 = vector.load %arg10[%c80, %c0_19] : memref<216x512xf32, #tpu.memory_space<vmem>>, vector<8x512xf32>
    tpu.vector_store %arg10[%c80, %c0_19], %82 {strides = array<i32>} : memref<216x512xf32, #tpu.memory_space<vmem>>, vector<8x512xf32>,
    %84 = vector.extract_strided_slice %5 {offsets = [0, 505], sizes = [8, 7], strides = [1, 1]} : vector<8x512xf32> to vector<8x7xf32>
    %85 = vector.extract_strided_slice %5 {offsets = [0, 0], sizes = [8, 505], strides = [1, 1]} : vector<8x512xf32> to vector<8x505xf32>
    %86 = tpu.concatenate %84, %85 in 1 : vector<8x7xf32>, vector<8x505xf32> -> vector<8x512xf32>
    %87 = vector.extract_strided_slice %6 {offsets = [11, 0], sizes = [1, 512], strides = [1, 1]} : vector<27x512xf32> to vector<1x512xf32>
    %88 = vector.broadcast %87 : vector<1x512xf32> to vector<8x512xf32>
    %89 = arith.mulf %86, %88 : vector<8x512xf32>
    %c88 = arith.constant 88 : index
    %c0_20 = arith.constant 0 : index
    %90 = vector.load %arg10[%c88, %c0_20] : memref<216x512xf32, #tpu.memory_space<vmem>>, vector<8x512xf32>
    tpu.vector_store %arg10[%c88, %c0_20], %89 {strides = array<i32>} : memref<216x512xf32, #tpu.memory_space<vmem>>, vector<8x512xf32>,
    %91 = vector.extract_strided_slice %5 {offsets = [0, 511], sizes = [8, 1], strides = [1, 1]} : vector<8x512xf32> to vector<8x1xf32>
    %92 = vector.extract_strided_slice %5 {offsets = [0, 0], sizes = [8, 511], strides = [1, 1]} : vector<8x512xf32> to vector<8x511xf32>
    %93 = tpu.concatenate %91, %92 in 1 : vector<8x1xf32>, vector<8x511xf32> -> vector<8x512xf32>
    %94 = vector.extract_strided_slice %6 {offsets = [12, 0], sizes = [1, 512], strides = [1, 1]} : vector<27x512xf32> to vector<1x512xf32>
    %95 = vector.broadcast %94 : vector<1x512xf32> to vector<8x512xf32>
    %96 = arith.mulf %93, %95 : vector<8x512xf32>
    %c96 = arith.constant 96 : index
    %c0_21 = arith.constant 0 : index
    %97 = vector.load %arg10[%c96, %c0_21] : memref<216x512xf32, #tpu.memory_space<vmem>>, vector<8x512xf32>
    tpu.vector_store %arg10[%c96, %c0_21], %96 {strides = array<i32>} : memref<216x512xf32, #tpu.memory_space<vmem>>, vector<8x512xf32>,
    %98 = vector.extract_strided_slice %6 {offsets = [13, 0], sizes = [1, 512], strides = [1, 1]} : vector<27x512xf32> to vector<1x512xf32>
    %99 = vector.broadcast %98 : vector<1x512xf32> to vector<8x512xf32>
    %100 = arith.mulf %5, %99 : vector<8x512xf32>
    %c104 = arith.constant 104 : index
    %c0_22 = arith.constant 0 : index
    %101 = vector.load %arg10[%c104, %c0_22] : memref<216x512xf32, #tpu.memory_space<vmem>>, vector<8x512xf32>
    tpu.vector_store %arg10[%c104, %c0_22], %100 {strides = array<i32>} : memref<216x512xf32, #tpu.memory_space<vmem>>, vector<8x512xf32>,
    %102 = vector.extract_strided_slice %5 {offsets = [0, 1], sizes = [8, 511], strides = [1, 1]} : vector<8x512xf32> to vector<8x511xf32>
    %103 = vector.extract_strided_slice %5 {offsets = [0, 0], sizes = [8, 1], strides = [1, 1]} : vector<8x512xf32> to vector<8x1xf32>
    %104 = tpu.concatenate %102, %103 in 1 : vector<8x511xf32>, vector<8x1xf32> -> vector<8x512xf32>
    %105 = vector.extract_strided_slice %6 {offsets = [14, 0], sizes = [1, 512], strides = [1, 1]} : vector<27x512xf32> to vector<1x512xf32>
    %106 = vector.broadcast %105 : vector<1x512xf32> to vector<8x512xf32>
    %107 = arith.mulf %104, %106 : vector<8x512xf32>
    %c112 = arith.constant 112 : index
    %c0_23 = arith.constant 0 : index
    %108 = vector.load %arg10[%c112, %c0_23] : memref<216x512xf32, #tpu.memory_space<vmem>>, vector<8x512xf32>
    tpu.vector_store %arg10[%c112, %c0_23], %107 {strides = array<i32>} : memref<216x512xf32, #tpu.memory_space<vmem>>, vector<8x512xf32>,
    %109 = vector.extract_strided_slice %5 {offsets = [0, 7], sizes = [8, 505], strides = [1, 1]} : vector<8x512xf32> to vector<8x505xf32>
    %110 = vector.extract_strided_slice %5 {offsets = [0, 0], sizes = [8, 7], strides = [1, 1]} : vector<8x512xf32> to vector<8x7xf32>
    %111 = tpu.concatenate %109, %110 in 1 : vector<8x505xf32>, vector<8x7xf32> -> vector<8x512xf32>
    %112 = vector.extract_strided_slice %6 {offsets = [15, 0], sizes = [1, 512], strides = [1, 1]} : vector<27x512xf32> to vector<1x512xf32>
    %113 = vector.broadcast %112 : vector<1x512xf32> to vector<8x512xf32>
    %114 = arith.mulf %111, %113 : vector<8x512xf32>
    %c120 = arith.constant 120 : index
    %c0_24 = arith.constant 0 : index
    %115 = vector.load %arg10[%c120, %c0_24] : memref<216x512xf32, #tpu.memory_space<vmem>>, vector<8x512xf32>
    tpu.vector_store %arg10[%c120, %c0_24], %114 {strides = array<i32>} : memref<216x512xf32, #tpu.memory_space<vmem>>, vector<8x512xf32>,
    %116 = vector.extract_strided_slice %5 {offsets = [0, 8], sizes = [8, 504], strides = [1, 1]} : vector<8x512xf32> to vector<8x504xf32>
    %117 = vector.extract_strided_slice %5 {offsets = [0, 0], sizes = [8, 8], strides = [1, 1]} : vector<8x512xf32> to vector<8x8xf32>
    %118 = tpu.concatenate %116, %117 in 1 : vector<8x504xf32>, vector<8x8xf32> -> vector<8x512xf32>
    %119 = vector.extract_strided_slice %6 {offsets = [16, 0], sizes = [1, 512], strides = [1, 1]} : vector<27x512xf32> to vector<1x512xf32>
    %120 = vector.broadcast %119 : vector<1x512xf32> to vector<8x512xf32>
    %121 = arith.mulf %118, %120 : vector<8x512xf32>
    %c128 = arith.constant 128 : index
    %c0_25 = arith.constant 0 : index
    %122 = vector.load %arg10[%c128, %c0_25] : memref<216x512xf32, #tpu.memory_space<vmem>>, vector<8x512xf32>
    tpu.vector_store %arg10[%c128, %c0_25], %121 {strides = array<i32>} : memref<216x512xf32, #tpu.memory_space<vmem>>, vector<8x512xf32>,
    %123 = vector.extract_strided_slice %5 {offsets = [0, 9], sizes = [8, 503], strides = [1, 1]} : vector<8x512xf32> to vector<8x503xf32>
    %124 = vector.extract_strided_slice %5 {offsets = [0, 0], sizes = [8, 9], strides = [1, 1]} : vector<8x512xf32> to vector<8x9xf32>
    %125 = tpu.concatenate %123, %124 in 1 : vector<8x503xf32>, vector<8x9xf32> -> vector<8x512xf32>
    %126 = vector.extract_strided_slice %6 {offsets = [17, 0], sizes = [1, 512], strides = [1, 1]} : vector<27x512xf32> to vector<1x512xf32>
    %127 = vector.broadcast %126 : vector<1x512xf32> to vector<8x512xf32>
    %128 = arith.mulf %125, %127 : vector<8x512xf32>
    %c136 = arith.constant 136 : index
    %c0_26 = arith.constant 0 : index
    %129 = vector.load %arg10[%c136, %c0_26] : memref<216x512xf32, #tpu.memory_space<vmem>>, vector<8x512xf32>
    tpu.vector_store %arg10[%c136, %c0_26], %128 {strides = array<i32>} : memref<216x512xf32, #tpu.memory_space<vmem>>, vector<8x512xf32>,
    %130 = vector.extract_strided_slice %5 {offsets = [0, 55], sizes = [8, 457], strides = [1, 1]} : vector<8x512xf32> to vector<8x457xf32>
    %131 = vector.extract_strided_slice %5 {offsets = [0, 0], sizes = [8, 55], strides = [1, 1]} : vector<8x512xf32> to vector<8x55xf32>
    %132 = tpu.concatenate %130, %131 in 1 : vector<8x457xf32>, vector<8x55xf32> -> vector<8x512xf32>
    %133 = vector.extract_strided_slice %6 {offsets = [18, 0], sizes = [1, 512], strides = [1, 1]} : vector<27x512xf32> to vector<1x512xf32>
    %134 = vector.broadcast %133 : vector<1x512xf32> to vector<8x512xf32>
    %135 = arith.mulf %132, %134 : vector<8x512xf32>
    %c144 = arith.constant 144 : index
    %c0_27 = arith.constant 0 : index
    %136 = vector.load %arg10[%c144, %c0_27] : memref<216x512xf32, #tpu.memory_space<vmem>>, vector<8x512xf32>
    tpu.vector_store %arg10[%c144, %c0_27], %135 {strides = array<i32>} : memref<216x512xf32, #tpu.memory_space<vmem>>, vector<8x512xf32>,
    %137 = vector.extract_strided_slice %5 {offsets = [0, 56], sizes = [8, 456], strides = [1, 1]} : vector<8x512xf32> to vector<8x456xf32>
    %138 = vector.extract_strided_slice %5 {offsets = [0, 0], sizes = [8, 56], strides = [1, 1]} : vector<8x512xf32> to vector<8x56xf32>
    %139 = tpu.concatenate %137, %138 in 1 : vector<8x456xf32>, vector<8x56xf32> -> vector<8x512xf32>
    %140 = vector.extract_strided_slice %6 {offsets = [19, 0], sizes = [1, 512], strides = [1, 1]} : vector<27x512xf32> to vector<1x512xf32>
    %141 = vector.broadcast %140 : vector<1x512xf32> to vector<8x512xf32>
    %142 = arith.mulf %139, %141 : vector<8x512xf32>
    %c152 = arith.constant 152 : index
    %c0_28 = arith.constant 0 : index
    %143 = vector.load %arg10[%c152, %c0_28] : memref<216x512xf32, #tpu.memory_space<vmem>>, vector<8x512xf32>
    tpu.vector_store %arg10[%c152, %c0_28], %142 {strides = array<i32>} : memref<216x512xf32, #tpu.memory_space<vmem>>, vector<8x512xf32>,
    %144 = vector.extract_strided_slice %5 {offsets = [0, 57], sizes = [8, 455], strides = [1, 1]} : vector<8x512xf32> to vector<8x455xf32>
    %145 = vector.extract_strided_slice %5 {offsets = [0, 0], sizes = [8, 57], strides = [1, 1]} : vector<8x512xf32> to vector<8x57xf32>
    %146 = tpu.concatenate %144, %145 in 1 : vector<8x455xf32>, vector<8x57xf32> -> vector<8x512xf32>
    %147 = vector.extract_strided_slice %6 {offsets = [20, 0], sizes = [1, 512], strides = [1, 1]} : vector<27x512xf32> to vector<1x512xf32>
    %148 = vector.broadcast %147 : vector<1x512xf32> to vector<8x512xf32>
    %149 = arith.mulf %146, %148 : vector<8x512xf32>
    %c160 = arith.constant 160 : index
    %c0_29 = arith.constant 0 : index
    %150 = vector.load %arg10[%c160, %c0_29] : memref<216x512xf32, #tpu.memory_space<vmem>>, vector<8x512xf32>
    tpu.vector_store %arg10[%c160, %c0_29], %149 {strides = array<i32>} : memref<216x512xf32, #tpu.memory_space<vmem>>, vector<8x512xf32>,
    %151 = vector.extract_strided_slice %5 {offsets = [0, 63], sizes = [8, 449], strides = [1, 1]} : vector<8x512xf32> to vector<8x449xf32>
    %152 = vector.extract_strided_slice %5 {offsets = [0, 0], sizes = [8, 63], strides = [1, 1]} : vector<8x512xf32> to vector<8x63xf32>
    %153 = tpu.concatenate %151, %152 in 1 : vector<8x449xf32>, vector<8x63xf32> -> vector<8x512xf32>
    %154 = vector.extract_strided_slice %6 {offsets = [21, 0], sizes = [1, 512], strides = [1, 1]} : vector<27x512xf32> to vector<1x512xf32>
    %155 = vector.broadcast %154 : vector<1x512xf32> to vector<8x512xf32>
    %156 = arith.mulf %153, %155 : vector<8x512xf32>
    %c168 = arith.constant 168 : index
    %c0_30 = arith.constant 0 : index
    %157 = vector.load %arg10[%c168, %c0_30] : memref<216x512xf32, #tpu.memory_space<vmem>>, vector<8x512xf32>
    tpu.vector_store %arg10[%c168, %c0_30], %156 {strides = array<i32>} : memref<216x512xf32, #tpu.memory_space<vmem>>, vector<8x512xf32>,
    %158 = vector.extract_strided_slice %5 {offsets = [0, 64], sizes = [8, 448], strides = [1, 1]} : vector<8x512xf32> to vector<8x448xf32>
    %159 = vector.extract_strided_slice %5 {offsets = [0, 0], sizes = [8, 64], strides = [1, 1]} : vector<8x512xf32> to vector<8x64xf32>
    %160 = tpu.concatenate %158, %159 in 1 : vector<8x448xf32>, vector<8x64xf32> -> vector<8x512xf32>
    %161 = vector.extract_strided_slice %6 {offsets = [22, 0], sizes = [1, 512], strides = [1, 1]} : vector<27x512xf32> to vector<1x512xf32>
    %162 = vector.broadcast %161 : vector<1x512xf32> to vector<8x512xf32>
    %163 = arith.mulf %160, %162 : vector<8x512xf32>
    %c176 = arith.constant 176 : index
    %c0_31 = arith.constant 0 : index
    %164 = vector.load %arg10[%c176, %c0_31] : memref<216x512xf32, #tpu.memory_space<vmem>>, vector<8x512xf32>
    tpu.vector_store %arg10[%c176, %c0_31], %163 {strides = array<i32>} : memref<216x512xf32, #tpu.memory_space<vmem>>, vector<8x512xf32>,
    %165 = vector.extract_strided_slice %5 {offsets = [0, 65], sizes = [8, 447], strides = [1, 1]} : vector<8x512xf32> to vector<8x447xf32>
    %166 = vector.extract_strided_slice %5 {offsets = [0, 0], sizes = [8, 65], strides = [1, 1]} : vector<8x512xf32> to vector<8x65xf32>
    %167 = tpu.concatenate %165, %166 in 1 : vector<8x447xf32>, vector<8x65xf32> -> vector<8x512xf32>
    %168 = vector.extract_strided_slice %6 {offsets = [23, 0], sizes = [1, 512], strides = [1, 1]} : vector<27x512xf32> to vector<1x512xf32>
    %169 = vector.broadcast %168 : vector<1x512xf32> to vector<8x512xf32>
    %170 = arith.mulf %167, %169 : vector<8x512xf32>
    %c184 = arith.constant 184 : index
    %c0_32 = arith.constant 0 : index
    %171 = vector.load %arg10[%c184, %c0_32] : memref<216x512xf32, #tpu.memory_space<vmem>>, vector<8x512xf32>
    tpu.vector_store %arg10[%c184, %c0_32], %170 {strides = array<i32>} : memref<216x512xf32, #tpu.memory_space<vmem>>, vector<8x512xf32>,
    %172 = vector.extract_strided_slice %5 {offsets = [0, 71], sizes = [8, 441], strides = [1, 1]} : vector<8x512xf32> to vector<8x441xf32>
    %173 = vector.extract_strided_slice %5 {offsets = [0, 0], sizes = [8, 71], strides = [1, 1]} : vector<8x512xf32> to vector<8x71xf32>
    %174 = tpu.concatenate %172, %173 in 1 : vector<8x441xf32>, vector<8x71xf32> -> vector<8x512xf32>
    %175 = vector.extract_strided_slice %6 {offsets = [24, 0], sizes = [1, 512], strides = [1, 1]} : vector<27x512xf32> to vector<1x512xf32>
    %176 = vector.broadcast %175 : vector<1x512xf32> to vector<8x512xf32>
    %177 = arith.mulf %174, %176 : vector<8x512xf32>
    %c192 = arith.constant 192 : index
    %c0_33 = arith.constant 0 : index
    %178 = vector.load %arg10[%c192, %c0_33] : memref<216x512xf32, #tpu.memory_space<vmem>>, vector<8x512xf32>
    tpu.vector_store %arg10[%c192, %c0_33], %177 {strides = array<i32>} : memref<216x512xf32, #tpu.memory_space<vmem>>, vector<8x512xf32>,
    %179 = vector.extract_strided_slice %5 {offsets = [0, 72], sizes = [8, 440], strides = [1, 1]} : vector<8x512xf32> to vector<8x440xf32>
    %180 = vector.extract_strided_slice %5 {offsets = [0, 0], sizes = [8, 72], strides = [1, 1]} : vector<8x512xf32> to vector<8x72xf32>
    %181 = tpu.concatenate %179, %180 in 1 : vector<8x440xf32>, vector<8x72xf32> -> vector<8x512xf32>
    %182 = vector.extract_strided_slice %6 {offsets = [25, 0], sizes = [1, 512], strides = [1, 1]} : vector<27x512xf32> to vector<1x512xf32>
    %183 = vector.broadcast %182 : vector<1x512xf32> to vector<8x512xf32>
    %184 = arith.mulf %181, %183 : vector<8x512xf32>
    %c200 = arith.constant 200 : index
    %c0_34 = arith.constant 0 : index
    %185 = vector.load %arg10[%c200, %c0_34] : memref<216x512xf32, #tpu.memory_space<vmem>>, vector<8x512xf32>
    tpu.vector_store %arg10[%c200, %c0_34], %184 {strides = array<i32>} : memref<216x512xf32, #tpu.memory_space<vmem>>, vector<8x512xf32>,
    %186 = vector.extract_strided_slice %5 {offsets = [0, 73], sizes = [8, 439], strides = [1, 1]} : vector<8x512xf32> to vector<8x439xf32>
    %187 = vector.extract_strided_slice %5 {offsets = [0, 0], sizes = [8, 73], strides = [1, 1]} : vector<8x512xf32> to vector<8x73xf32>
    %188 = tpu.concatenate %186, %187 in 1 : vector<8x439xf32>, vector<8x73xf32> -> vector<8x512xf32>
    %189 = vector.extract_strided_slice %6 {offsets = [26, 0], sizes = [1, 512], strides = [1, 1]} : vector<27x512xf32> to vector<1x512xf32>
    %190 = vector.broadcast %189 : vector<1x512xf32> to vector<8x512xf32>
    %191 = arith.mulf %188, %190 : vector<8x512xf32>
    %c208 = arith.constant 208 : index
    %c0_35 = arith.constant 0 : index
    %192 = vector.load %arg10[%c208, %c0_35] : memref<216x512xf32, #tpu.memory_space<vmem>>, vector<8x512xf32>
    tpu.vector_store %arg10[%c208, %c0_35], %191 {strides = array<i32>} : memref<216x512xf32, #tpu.memory_space<vmem>>, vector<8x512xf32>,
    %c0_36 = arith.constant 0 : index
    %c0_37 = arith.constant 0 : index
    %193 = vector.load %arg10[%c0_36, %c0_37] : memref<216x512xf32, #tpu.memory_space<vmem>>, vector<216x512xf32>
    %194 = arith.truncf %193 : vector<216x512xf32> to vector<216x512xbf16>
    %c0_38 = arith.constant 0 : index
    %c0_39 = arith.constant 0 : index
    %195 = vector.load %arg3[%c0_38, %c0_39] : memref<8x216xbf16, #tpu.memory_space<vmem>>, vector<8x216xbf16>
    %cst = arith.constant dense<0.000000e+00> : vector<8x512xf32>
    %196 = tpu.matmul %195, %194, %cst {dimension_numbers = #tpu.dot_dimension_numbers<[1], [0], [0], [1], [0, 0, 1, 1], [], []>} : vector<8x216xbf16>, vector<216x512xbf16>, vector<8x512xf32> -> vector<8x512xf32>
    %197 = vector.broadcast %0 : vector<8x1xf32> to vector<8x512xf32>
    %198 = arith.addf %196, %197 : vector<8x512xf32>
    %cst_40 = arith.constant dense<0.000000e+00> : vector<8xf32>
    %199 = vector.multi_reduction <add>, %198, %cst_40 [1] : vector<8x512xf32> to vector<8xf32>
    %200 = vector.shape_cast %199 : vector<8xf32> to vector<8x1xf32>
    %cst_41 = arith.constant 0.001953125 : f32
    %201 = vector.broadcast %cst_41 : f32 to vector<8x1xf32>
    %202 = arith.mulf %200, %201 : vector<8x1xf32>
    %203 = arith.mulf %198, %198 : vector<8x512xf32>
    %cst_42 = arith.constant dense<0.000000e+00> : vector<8xf32>
    %204 = vector.multi_reduction <add>, %203, %cst_42 [1] : vector<8x512xf32> to vector<8xf32>
    %205 = vector.shape_cast %204 : vector<8xf32> to vector<8x1xf32>
    %cst_43 = arith.constant 0.001953125 : f32
    %206 = vector.broadcast %cst_43 : f32 to vector<8x1xf32>
    %207 = arith.mulf %205, %206 : vector<8x1xf32>
    %208 = arith.mulf %202, %202 : vector<8x1xf32>
    %209 = arith.subf %207, %208 : vector<8x1xf32>
    %210 = vector.broadcast %202 : vector<8x1xf32> to vector<8x512xf32>
    %211 = arith.subf %198, %210 : vector<8x512xf32>
    %cst_44 = arith.constant 9.99999974E-6 : f32
    %212 = vector.broadcast %cst_44 : f32 to vector<8x1xf32>
    %213 = arith.addf %209, %212 : vector<8x1xf32>
    %214 = math.rsqrt %213 : vector<8x1xf32>
    %215 = vector.broadcast %214 : vector<8x1xf32> to vector<8x512xf32>
    %216 = arith.mulf %211, %215 : vector<8x512xf32>
    %cst_45 = arith.constant 0.000000e+00 : f32
    %217 = vector.broadcast %cst_45 : f32 to vector<8x512xf32>
    %218 = arith.cmpf oge, %216, %217 : vector<8x512xf32>
    %cst_46 = arith.constant 0.00999999977 : f32
    %219 = vector.broadcast %cst_46 : f32 to vector<8x512xf32>
    %220 = arith.mulf %219, %216 : vector<8x512xf32>
    %221 = arith.select %218, %216, %220 : vector<8x512xi1>, vector<8x512xf32>
    %cst_47 = arith.constant dense<0.000000e+00> : vector<8xf32>
    %222 = vector.multi_reduction <add>, %221, %cst_47 [1] : vector<8x512xf32> to vector<8xf32>
    %223 = vector.shape_cast %222 : vector<8xf32> to vector<8x1xf32>
    %cst_48 = arith.constant 0.001953125 : f32
    %224 = vector.broadcast %cst_48 : f32 to vector<8x1xf32>
    %225 = arith.mulf %223, %224 : vector<8x1xf32>
    %c0_49 = arith.constant 0 : index
    %c0_50 = arith.constant 0 : index
    %226 = vector.load %arg5[%c0_49, %c0_50] : memref<8x8xf32, #tpu.memory_space<vmem>>, vector<8x8xf32>
    %227 = vector.broadcast %225 : vector<8x1xf32> to vector<8x8xf32>
    %228 = arith.mulf %227, %226 : vector<8x8xf32>
    %cst_51 = arith.constant dense<0.000000e+00> : vector<8xf32>
    %229 = vector.multi_reduction <add>, %228, %cst_51 [0] : vector<8x8xf32> to vector<8xf32>
    %230 = vector.shape_cast %229 : vector<8xf32> to vector<1x8xf32>
    %c0_52 = arith.constant 0 : index
    %c0_53 = arith.constant 0 : index
    %231 = vector.load %arg6[%c0_52, %c0_53] : memref<1x8xf32, #tpu.memory_space<vmem>>, vector<1x8xf32>
    %232 = arith.addf %230, %231 : vector<1x8xf32>
    %cst_54 = arith.constant 0.000000e+00 : f32
    %233 = vector.broadcast %cst_54 : f32 to vector<1x8xf32>
    %234 = arith.cmpf oge, %232, %233 : vector<1x8xf32>
    %cst_55 = arith.constant 0.00999999977 : f32
    %235 = vector.broadcast %cst_55 : f32 to vector<1x8xf32>
    %236 = arith.mulf %235, %232 : vector<1x8xf32>
    %237 = arith.select %234, %232, %236 : vector<1x8xi1>, vector<1x8xf32>
    %c0_56 = arith.constant 0 : index
    %c0_57 = arith.constant 0 : index
    %238 = vector.load %arg7[%c0_56, %c0_57] : memref<8x8xf32, #tpu.memory_space<vmem>>, vector<8x8xf32>
    %cst_58 = arith.constant dense<0.000000e+00> : vector<1x8xf32>
    %239 = tpu.matmul %237, %238, %cst_58 {dimension_numbers = #tpu.dot_dimension_numbers<[1], [0], [0], [1], [0, 0, 1, 1], [], []>} : vector<1x8xf32>, vector<8x8xf32>, vector<1x8xf32> -> vector<1x8xf32>
    %c0_59 = arith.constant 0 : index
    %c0_60 = arith.constant 0 : index
    %240 = vector.load %arg8[%c0_59, %c0_60] : memref<1x8xf32, #tpu.memory_space<vmem>>, vector<1x8xf32>
    %241 = arith.addf %239, %240 : vector<1x8xf32>
    %242 = tpu.iota {dimensions = array<i32: 0>} : vector<8x8xi32>
    %243 = tpu.iota {dimensions = array<i32: 1>} : vector<8x8xi32>
    %244 = vector.shape_cast %241 : vector<1x8xf32> to vector<1x8xf32>
    %245 = vector.broadcast %244 : vector<1x8xf32> to vector<8x8xf32>
    %246 = arith.cmpi eq, %242, %243 : vector<8x8xi32>
    %cst_61 = arith.constant 0.000000e+00 : f32
    %247 = vector.broadcast %cst_61 : f32 to vector<8x8xf32>
    %248 = arith.select %246, %245, %247 : vector<8x8xi1>, vector<8x8xf32>
    %cst_62 = arith.constant 1.000000e+00 : f32
    %249 = vector.broadcast %cst_62 : f32 to vector<8x1xf32>
    %cst_63 = arith.constant dense<0.000000e+00> : vector<8x1xf32>
    %250 = tpu.matmul %248, %249, %cst_63 {dimension_numbers = #tpu.dot_dimension_numbers<[1], [0], [0], [1], [0, 0, 1, 1], [], []>} : vector<8x8xf32>, vector<8x1xf32>, vector<8x1xf32> -> vector<8x1xf32>
    %251 = vector.broadcast %250 : vector<8x1xf32> to vector<8x8xf32>
    %252 = arith.cmpf ogt, %251, %245 : vector<8x8xf32>
    %253 = vector.broadcast %250 : vector<8x1xf32> to vector<8x8xf32>
    %254 = arith.cmpf oeq, %253, %245 : vector<8x8xf32>
    %255 = arith.cmpi slt, %242, %243 : vector<8x8xi32>
    %256 = arith.andi %254, %255 : vector<8x8xi1>
    %257 = arith.ori %252, %256 : vector<8x8xi1>
    %258 = arith.extui %257 : vector<8x8xi1> to vector<8x8xi32>
    %259 = arith.sitofp %258 : vector<8x8xi32> to vector<8x8xf32>
    %cst_64 = arith.constant dense<0.000000e+00> : vector<8xf32>
    %260 = vector.multi_reduction <add>, %259, %cst_64 [0] : vector<8x8xf32> to vector<8xf32>
    %261 = vector.shape_cast %260 : vector<8xf32> to vector<1x8xf32>
    %262 = arith.sitofp %242 : vector<8x8xi32> to vector<8x8xf32>
    %263 = vector.broadcast %261 : vector<1x8xf32> to vector<8x8xf32>
    %264 = arith.cmpf oeq, %262, %263 : vector<8x8xf32>
    %265 = arith.extui %264 : vector<8x8xi1> to vector<8x8xi32>
    %266 = arith.sitofp %265 : vector<8x8xi32> to vector<8x8xf32>
    %cst_65 = arith.constant dense<0.000000e+00> : vector<8x512xf32>
    %267 = tpu.matmul %266, %221, %cst_65 {dimension_numbers = #tpu.dot_dimension_numbers<[1], [0], [0], [1], [0, 0, 1, 1], [], []>} : vector<8x8xf32>, vector<8x512xf32>, vector<8x512xf32> -> vector<8x512xf32>
    %268 = arith.addf %221, %267 : vector<8x512xf32>
    %cst_66 = arith.constant dense<0.000000e+00> : vector<8xf32>
    %269 = vector.multi_reduction <add>, %268, %cst_66 [1] : vector<8x512xf32> to vector<8xf32>
    %270 = vector.shape_cast %269 : vector<8xf32> to vector<8x1xf32>
    %cst_67 = arith.constant 0.001953125 : f32
    %271 = vector.broadcast %cst_67 : f32 to vector<8x1xf32>
    %272 = arith.mulf %270, %271 : vector<8x1xf32>
    %273 = arith.mulf %268, %268 : vector<8x512xf32>
    %cst_68 = arith.constant dense<0.000000e+00> : vector<8xf32>
    %274 = vector.multi_reduction <add>, %273, %cst_68 [1] : vector<8x512xf32> to vector<8xf32>
    %275 = vector.shape_cast %274 : vector<8xf32> to vector<8x1xf32>
    %cst_69 = arith.constant 0.001953125 : f32
    %276 = vector.broadcast %cst_69 : f32 to vector<8x1xf32>
    %277 = arith.mulf %275, %276 : vector<8x1xf32>
    %278 = arith.mulf %272, %272 : vector<8x1xf32>
    %279 = arith.subf %277, %278 : vector<8x1xf32>
    %280 = vector.broadcast %272 : vector<8x1xf32> to vector<8x512xf32>
    %281 = arith.subf %268, %280 : vector<8x512xf32>
    %cst_70 = arith.constant 9.99999974E-6 : f32
    %282 = vector.broadcast %cst_70 : f32 to vector<8x1xf32>
    %283 = arith.addf %279, %282 : vector<8x1xf32>
    %284 = math.rsqrt %283 : vector<8x1xf32>
    %285 = vector.broadcast %284 : vector<8x1xf32> to vector<8x512xf32>
    %286 = arith.mulf %281, %285 : vector<8x512xf32>
    %287 = vector.broadcast %1 : vector<8x1xf32> to vector<8x512xf32>
    %288 = arith.mulf %286, %287 : vector<8x512xf32>
    %289 = vector.broadcast %2 : vector<8x1xf32> to vector<8x512xf32>
    %290 = arith.addf %288, %289 : vector<8x512xf32>
    %cst_71 = arith.constant 0.000000e+00 : f32
    %291 = vector.broadcast %cst_71 : f32 to vector<8x512xf32>
    %292 = arith.cmpf oge, %290, %291 : vector<8x512xf32>
    %cst_72 = arith.constant 0.00999999977 : f32
    %293 = vector.broadcast %cst_72 : f32 to vector<8x512xf32>
    %294 = arith.mulf %293, %290 : vector<8x512xf32>
    %295 = arith.select %292, %290, %294 : vector<8x512xi1>, vector<8x512xf32>
    %c0_73 = arith.constant 0 : index
    %c0_74 = arith.constant 0 : index
    %c0_75 = arith.constant 0 : index
    %296 = vector.load %arg9[%c0_73, %c0_74, %c0_75] : memref<1x8x512xf32, #tpu.memory_space<vmem>>, vector<1x8x512xf32>
    %297 = vector.shape_cast %296 : vector<1x8x512xf32> to vector<8x512xf32>
    %298 = vector.shape_cast %295 : vector<8x512xf32> to vector<1x8x512xf32>
    tpu.vector_store %arg9[%c0_73, %c0_74, %c0_75], %298 {strides = array<i32>} : memref<1x8x512xf32, #tpu.memory_space<vmem>>, vector<1x8x512xf32>,
    return
  }
  func.func @transform_0(%arg0: i32) -> (i32, i32, i32) {
    %c0_i32 = arith.constant 0 : i32
    %c0_i32_0 = arith.constant 0 : i32
    %c0_i32_1 = arith.constant 0 : i32
    return %arg0, %c0_i32, %c0_i32_0 : i32, i32, i32
  }
  func.func @transform_1(%arg0: i32) -> (i32, i32) {
    %c0_i32 = arith.constant 0 : i32
    %c0_i32_0 = arith.constant 0 : i32
    %c0_i32_1 = arith.constant 0 : i32
    return %c0_i32, %c0_i32_0 : i32, i32
  }
  func.func @transform_2(%arg0: i32) -> (i32, i32) {
    %c0_i32 = arith.constant 0 : i32
    %c0_i32_0 = arith.constant 0 : i32
    %c0_i32_1 = arith.constant 0 : i32
    return %c0_i32, %c0_i32_0 : i32, i32
  }
  func.func @transform_3(%arg0: i32) -> (i32, i32) {
    %c0_i32 = arith.constant 0 : i32
    %c0_i32_0 = arith.constant 0 : i32
    %c0_i32_1 = arith.constant 0 : i32
    return %c0_i32, %c0_i32_0 : i32, i32
  }
  func.func @transform_4(%arg0: i32) -> (i32, i32) {
    %c0_i32 = arith.constant 0 : i32
    %c0_i32_0 = arith.constant 0 : i32
    %c0_i32_1 = arith.constant 0 : i32
    return %c0_i32, %c0_i32_0 : i32, i32
  }
  func.func @transform_5(%arg0: i32) -> (i32, i32) {
    %c0_i32 = arith.constant 0 : i32
    %c0_i32_0 = arith.constant 0 : i32
    %c0_i32_1 = arith.constant 0 : i32
    return %c0_i32, %c0_i32_0 : i32, i32
  }
  func.func @transform_6(%arg0: i32) -> (i32, i32) {
    %c0_i32 = arith.constant 0 : i32
    %c0_i32_0 = arith.constant 0 : i32
    %c0_i32_1 = arith.constant 0 : i32
    return %c0_i32, %c0_i32_0 : i32, i32
  }
  func.func @transform_7(%arg0: i32) -> (i32, i32) {
    %c0_i32 = arith.constant 0 : i32
    %c0_i32_0 = arith.constant 0 : i32
    %c0_i32_1 = arith.constant 0 : i32
    return %c0_i32, %c0_i32_0 : i32, i32
  }
  func.func @transform_8(%arg0: i32) -> (i32, i32, i32) {
    %c0_i32 = arith.constant 0 : i32
    %c0_i32_0 = arith.constant 0 : i32
    %c0_i32_1 = arith.constant 0 : i32
    return %arg0, %c0_i32, %c0_i32_0 : i32, i32, i32
  }
}

</mosaic_0001>

<llo_original>
// kernel: tpu_custom_call.1
$region0: #{tpu_custom_call.1}
  #allocation0 [shape = 'u32[]', space=smem, size = 0x4, offset = 0x4, fixed_abs, tag = 'smem constant byte address 0x4 - core index']
  #allocation1 [shape = 'u32[144,128]{1,0:T(1,128)}', space=vmem, size = 0x12000, scoped, tag = 'internal scratch']
  #allocation2 [shape = 'f32[216,512]{1,0:T(8,128)}', space=vmem, size = 0x6c000, scoped, tag = 'scratch operand']
  %s0 = inlined_call_operand.hbm [shape: bf16[2,8,512], index: 0, kind: input, shape index: {}]
  %s1 = inlined_call_operand.hbm [shape: f32[27,512], index: 1, kind: input, shape index: {}]
  %s2 = inlined_call_operand.vmem [shape: bf16[8,216], index: 2, kind: input, shape index: {}]
  %s3 = inlined_call_operand.vmem [shape: f32[8,3], index: 3, kind: input, shape index: {}]
  %s4 = inlined_call_operand.vmem [shape: f32[8,8], index: 4, kind: input, shape index: {}]
  %s5 = inlined_call_operand.vmem [shape: f32[1,8], index: 5, kind: input, shape index: {}]
  %s6 = inlined_call_operand.hbm [shape: f32[8,8], index: 6, kind: input, shape index: {}]
  %s7 = inlined_call_operand.vmem [shape: f32[1,8], index: 7, kind: input, shape index: {}]
  %s8 = inlined_call_operand.hbm [shape: f32[2,8,512], index: 8, kind: output, shape index: {}]
  %s9 = sld [smem:[#allocation0]]
  $region77: #{tpu_custom_call.1} parent=0
    _
  %s11 = ssub.s32 1, %s9
  %s12 = scalar_select 0, %s11, %s9
  $region1: #{tpu_custom_call.1} parent=0
    #allocation3 [shape = 'u8[16384]{0}', space=vmem, size = 0x4000, scoped, tag = 'input window, operand 0']
    #allocation4 [shape = 's32[2]{0}', space=sflag, size = 0x8, scoped, tag = 'scoped memory for tpu_custom_call.1']
    #allocation5 [shape = 's32[2]{0}', space=sflag, size = 0x8, scoped, tag = 'scoped memory for tpu_custom_call.1']
    #allocation6 [shape = 'u8[65536]{0}', space=vmem, size = 0x10000, scoped, tag = 'input window, operand 1, single buffered']
    #allocation7 [shape = 's32[1]{0}', space=sflag, size = 0x4, scoped, tag = 'scoped memory for tpu_custom_call.1']
    #allocation8 [shape = 'u8[4096]{0}', space=vmem, size = 0x1000, scoped, tag = 'input window, operand 6, single buffered']
    #allocation9 [shape = 'u8[32768]{0}', space=vmem, size = 0x8000, scoped, tag = 'output window, operand 0']
    %13 = vsyncpa [#allocation4], 0
    %s14 = scalar_lea.sflag [#allocation4], 1
    %15 = vsyncpa %s14, 0
    %16 = vsyncpa [#allocation7], 0
    %17 = vsyncpa [#allocation5], 0
    %s18 = scalar_lea.sflag [#allocation5], 1
    %19 = vsyncpa %s18, 0
    loop: start=0, step=1, limit=4
    $region2: #{tpu_custom_call.1} parent=1 // loop_pre_header
      _
    $region3: #{tpu_custom_call.1} parent=1 // loop_header
      %s21 = sphi 0, %s25
      %p22 = scmp.ge.s32.totalorder %s21, 4
      %s31 = sphi 0, %s33
      %s34 = sphi 0, %s31
      %s35 = sphi 0, %s34
      %s51 = sphi 0, %s35
      %s55 = sphi 0, %s55
      %s57 = sphi 0, %s55
      %s58 = sphi 0, %s57
      %s72 = sphi 0, %s58
      %s76 = sphi 0, %s76
      %s78 = sphi 0, %s76
      %s79 = sphi 0, %s78
      %s93 = sphi 0, %s79
      %s97 = sphi 0, %s97
      %s99 = sphi 0, %s97
      %s100 = sphi 0, %s99
      %s114 = sphi 0, %s100
      %s118 = sphi 0, %s118
      %s120 = sphi 0, %s118
      %s121 = sphi 0, %s120
      %s135 = sphi 0, %s121
      %s139 = sphi 0, %s139
      %s141 = sphi 0, %s139
      %s142 = sphi 0, %s141
      %s156 = sphi 0, %s142
      %s160 = sphi 0, %s160
      %s162 = sphi 0, %s160
      %s163 = sphi 0, %s162
      %s177 = sphi 0, %s163
      %s181 = sphi 0, %s181
      %s183 = sphi 0, %s181
      %s184 = sphi 0, %s183
      %s198 = sphi 0, %s184
      %s204 = sphi 0, %s206
      %s207 = sphi 0, %s204
      %s208 = sphi 0, %s207
      %s224 = sphi 0, %s208
    $region4: #{tpu_custom_call.1} parent=1 // loop_header_branch
      %24 = sbr.rel (%p22) target = $region8
    $region5: #{tpu_custom_call.1} parent=1 // loop_body
      %s26 = ssub.s32 %s21, 1
      %s27 = ssub.s32 %s21, 2
      %s28 = sadd.s32 %s21, 1
      %s29 = ssub.s32 %s21, %s28
      %p30 = scmp.eq.s32.totalorder %s29, 0
      %s32 = sadd.s32 %s31, 1
      %s33 = scalar_select %p30, %s31, %s32
      %p36 = pneg %p30
      %p37 = scmp.eq.s32.totalorder %s21, 1
      %p38 = por %p36, %p37
      %p39 = scmp.ne.s32.totalorder %s31, %s34
      %p40 = scmp.eq.s32.totalorder %s21, 0
      %p41 = por %p39, %p40
      %p42 = scmp.ne.s32.totalorder %s31, %s34
      %p43 = scmp.eq.s32.totalorder %s26, 1
      %p44 = por %p42, %p43
      %p45 = scmp.ne.s32.totalorder %s34, %s35
      %p46 = scmp.eq.s32.totalorder %s26, 0
      %p47 = por %p45, %p46
      %p48 = scmp.ne.s32.totalorder %s34, %s35
      %p49 = scmp.eq.s32.totalorder %s27, 1
      %p50 = por %p48, %p49
      %p52 = scmp.ne.s32.totalorder %s35, %s51
      %p53 = scmp.eq.s32.totalorder %s27, 0
      %p54 = por %p52, %p53
      %s56 = sadd.s32 %s55, 1
      %p59 = scmp.eq.s32.totalorder %s21, 1
      %p60 = scmp.ne.s32.totalorder %s55, %s57
      %p61 = scmp.eq.s32.totalorder %s21, 0
      %p62 = por %p60, %p61
      %p63 = scmp.ne.s32.totalorder %s55, %s57
      %p64 = scmp.eq.s32.totalorder %s26, 1
      %p65 = por %p63, %p64
      %p66 = scmp.ne.s32.totalorder %s57, %s58
      %p67 = scmp.eq.s32.totalorder %s26, 0
      %p68 = por %p66, %p67
      %p69 = scmp.ne.s32.totalorder %s57, %s58
      %p70 = scmp.eq.s32.totalorder %s27, 1
      %p71 = por %p69, %p70
      %p73 = scmp.ne.s32.totalorder %s58, %s72
      %p74 = scmp.eq.s32.totalorder %s27, 0
      %p75 = por %p73, %p74
      %s77 = sadd.s32 %s76, 1
      %p80 = scmp.eq.s32.totalorder %s21, 1
      %p81 = scmp.ne.s32.totalorder %s76, %s78
      %p82 = scmp.eq.s32.totalorder %s21, 0
      %p83 = por %p81, %p82
      %p84 = scmp.ne.s32.totalorder %s76, %s78
      %p85 = scmp.eq.s32.totalorder %s26, 1
      %p86 = por %p84, %p85
      %p87 = scmp.ne.s32.totalorder %s78, %s79
      %p88 = scmp.eq.s32.totalorder %s26, 0
      %p89 = por %p87, %p88
      %p90 = scmp.ne.s32.totalorder %s78, %s79
      %p91 = scmp.eq.s32.totalorder %s27, 1
      %p92 = por %p90, %p91
      %p94 = scmp.ne.s32.totalorder %s79, %s93
      %p95 = scmp.eq.s32.totalorder %s27, 0
      %p96 = por %p94, %p95
      %s98 = sadd.s32 %s97, 1
      %p101 = scmp.eq.s32.totalorder %s21, 1
      %p102 = scmp.ne.s32.totalorder %s97, %s99
      %p103 = scmp.eq.s32.totalorder %s21, 0
      %p104 = por %p102, %p103
      %p105 = scmp.ne.s32.totalorder %s97, %s99
      %p106 = scmp.eq.s32.totalorder %s26, 1
      %p107 = por %p105, %p106
      %p108 = scmp.ne.s32.totalorder %s99, %s100
      %p109 = scmp.eq.s32.totalorder %s26, 0
      %p110 = por %p108, %p109
      %p111 = scmp.ne.s32.totalorder %s99, %s100
      %p112 = scmp.eq.s32.totalorder %s27, 1
      %p113 = por %p111, %p112
      %p115 = scmp.ne.s32.totalorder %s100, %s114
      %p116 = scmp.eq.s32.totalorder %s27, 0
      %p117 = por %p115, %p116
      %s119 = sadd.s32 %s118, 1
      %p122 = scmp.eq.s32.totalorder %s21, 1
      %p123 = scmp.ne.s32.totalorder %s118, %s120
      %p124 = scmp.eq.s32.totalorder %s21, 0
      %p125 = por %p123, %p124
      %p126 = scmp.ne.s32.totalorder %s118, %s120
      %p127 = scmp.eq.s32.totalorder %s26, 1
      %p128 = por %p126, %p127
      %p129 = scmp.ne.s32.totalorder %s120, %s121
      %p130 = scmp.eq.s32.totalorder %s26, 0
      %p131 = por %p129, %p130
      %p132 = scmp.ne.s32.totalorder %s120, %s121
      %p133 = scmp.eq.s32.totalorder %s27, 1
      %p134 = por %p132, %p133
      %p136 = scmp.ne.s32.totalorder %s121, %s135
      %p137 = scmp.eq.s32.totalorder %s27, 0
      %p138 = por %p136, %p137
      %s140 = sadd.s32 %s139, 1
      %p143 = scmp.eq.s32.totalorder %s21, 1
      %p144 = scmp.ne.s32.totalorder %s139, %s141
      %p145 = scmp.eq.s32.totalorder %s21, 0
      %p146 = por %p144, %p145
      %p147 = scmp.ne.s32.totalorder %s139, %s141
      %p148 = scmp.eq.s32.totalorder %s26, 1
      %p149 = por %p147, %p148
      %p150 = scmp.ne.s32.totalorder %s141, %s142
      %p151 = scmp.eq.s32.totalorder %s26, 0
      %p152 = por %p150, %p151
      %p153 = scmp.ne.s32.totalorder %s141, %s142
      %p154 = scmp.eq.s32.totalorder %s27, 1
      %p155 = por %p153, %p154
      %p157 = scmp.ne.s32.totalorder %s142, %s156
      %p158 = scmp.eq.s32.totalorder %s27, 0
      %p159 = por %p157, %p158
      %s161 = sadd.s32 %s160, 1
      %p164 = scmp.eq.s32.totalorder %s21, 1
      %p165 = scmp.ne.s32.totalorder %s160, %s162
      %p166 = scmp.eq.s32.totalorder %s21, 0
      %p167 = por %p165, %p166
      %p168 = scmp.ne.s32.totalorder %s160, %s162
      %p169 = scmp.eq.s32.totalorder %s26, 1
      %p170 = por %p168, %p169
      %p171 = scmp.ne.s32.totalorder %s162, %s163
      %p172 = scmp.eq.s32.totalorder %s26, 0
      %p173 = por %p171, %p172
      %p174 = scmp.ne.s32.totalorder %s162, %s163
      %p175 = scmp.eq.s32.totalorder %s27, 1
      %p176 = por %p174, %p175
      %p178 = scmp.ne.s32.totalorder %s163, %s177
      %p179 = scmp.eq.s32.totalorder %s27, 0
      %p180 = por %p178, %p179
      %s182 = sadd.s32 %s181, 1
      %p185 = scmp.eq.s32.totalorder %s21, 1
      %p186 = scmp.ne.s32.totalorder %s181, %s183
      %p187 = scmp.eq.s32.totalorder %s21, 0
      %p188 = por %p186, %p187
      %p189 = scmp.ne.s32.totalorder %s181, %s183
      %p190 = scmp.eq.s32.totalorder %s26, 1
      %p191 = por %p189, %p190
      %p192 = scmp.ne.s32.totalorder %s183, %s184
      %p193 = scmp.eq.s32.totalorder %s26, 0
      %p194 = por %p192, %p193
      %p195 = scmp.ne.s32.totalorder %s183, %s184
      %p196 = scmp.eq.s32.totalorder %s27, 1
      %p197 = por %p195, %p196
      %p199 = scmp.ne.s32.totalorder %s184, %s198
      %p200 = scmp.eq.s32.totalorder %s27, 0
      %p201 = por %p199, %p200
      %s202 = ssub.s32 %s21, %s28
      %p203 = scmp.eq.s32.totalorder %s202, 0
      %s205 = sadd.s32 %s204, 1
      %s206 = scalar_select %p203, %s204, %s205
      %p209 = pneg %p203
      %p210 = scmp.eq.s32.totalorder %s21, 1
      %p211 = por %p209, %p210
      %p212 = scmp.ne.s32.totalorder %s204, %s207
      %p213 = scmp.eq.s32.totalorder %s21, 0
      %p214 = por %p212, %p213
      %p215 = scmp.ne.s32.totalorder %s204, %s207
      %p216 = scmp.eq.s32.totalorder %s26, 1
      %p217 = por %p215, %p216
      %p218 = scmp.ne.s32.totalorder %s207, %s208
      %p219 = scmp.eq.s32.totalorder %s26, 0
      %p220 = por %p218, %p219
      %p221 = scmp.ne.s32.totalorder %s207, %s208
      %p222 = scmp.eq.s32.totalorder %s27, 1
      %p223 = por %p221, %p222
      %p225 = scmp.ne.s32.totalorder %s208, %s224
      %p226 = scmp.eq.s32.totalorder %s27, 0
      %p227 = por %p225, %p226
      %p228 = scmp.le.s32.totalorder 1, %s21
      %p229 = scmp.lt.s32.totalorder %s21, 3
      %p230 = pnand %p228, %p229
      %p231 = pneg %p230
      // Predicated region
      $region9: #{tpu_custom_call.1} parent=5 // pred_check
        _
      $region10: #{tpu_custom_call.1} parent=5 // pred_check_branch
        %233 = sbr.rel (%p230) target = $region12
      $region11: #{tpu_custom_call.1} parent=5 // pred_region
        %s234 = ssub.s32 %s21, 1
        // Predicated region
        $region13: #{tpu_custom_call.1} parent=11 // pred_check
          %p235 = pneg %p68
        $region14: #{tpu_custom_call.1} parent=11 // pred_check_branch
          %237 = sbr.rel (%p235) target = $region16
        $region15: #{tpu_custom_call.1} parent=11 // pred_region
          %s239 = ssub.s32 2048, 2048
          %240 = vsyncadd [#allocation7], %s239
          %s241 = sshll.u32 [#allocation6], 4
          %s242 = int_to_ptr.vmem [resolvable:$true] %s241
          %247 = dma.hbm_to_vmem [thread:$0]  %s1, 2048, %s242, [#allocation7], 512, 512, 32
        $region16: #{tpu_custom_call.1} parent=11 // pred_fallthru
          _
        // Predicated region
        $region17: #{tpu_custom_call.1} parent=11 // pred_check
          %p248 = pneg %p89
        $region18: #{tpu_custom_call.1} parent=11 // pred_check_branch
          %250 = sbr.rel (%p248) target = $region20
        $region19: #{tpu_custom_call.1} parent=11 // pred_region
          _
        $region20: #{tpu_custom_call.1} parent=11 // pred_fallthru
          _
        // Predicated region
        $region21: #{tpu_custom_call.1} parent=11 // pred_check
          %p251 = pneg %p110
        $region22: #{tpu_custom_call.1} parent=11 // pred_check_branch
          %253 = sbr.rel (%p251) target = $region24
        $region23: #{tpu_custom_call.1} parent=11 // pred_region
          _
        $region24: #{tpu_custom_call.1} parent=11 // pred_fallthru
          _
        // Predicated region
        $region25: #{tpu_custom_call.1} parent=11 // pred_check
          %p254 = pneg %p131
        $region26: #{tpu_custom_call.1} parent=11 // pred_check_branch
          %256 = sbr.rel (%p254) target = $region28
        $region27: #{tpu_custom_call.1} parent=11 // pred_region
          _
        $region28: #{tpu_custom_call.1} parent=11 // pred_fallthru
          _
        // Predicated region
        $region29: #{tpu_custom_call.1} parent=11 // pred_check
          %p257 = pneg %p152
        $region30: #{tpu_custom_call.1} parent=11 // pred_check_branch
          %259 = sbr.rel (%p257) target = $region32
        $region31: #{tpu_custom_call.1} parent=11 // pred_region
          _
        $region32: #{tpu_custom_call.1} parent=11 // pred_fallthru
          _
        // Predicated region
        $region33: #{tpu_custom_call.1} parent=11 // pred_check
          %p260 = pneg %p173
        $region34: #{tpu_custom_call.1} parent=11 // pred_check_branch
          %262 = sbr.rel (%p260) target = $region36
        $region35: #{tpu_custom_call.1} parent=11 // pred_region
          %s264 = ssub.s32 128, 128
          %265 = vsyncadd [#allocation7], %s264
          %s267 = sshll.u32 [#allocation8], 4
          %s268 = int_to_ptr.vmem [resolvable:$true] %s267
          %270 = dma.hbm_to_vmem [thread:$0]  %s6, 128, %s268, [#allocation7]
        $region36: #{tpu_custom_call.1} parent=11 // pred_fallthru
          _
        // Predicated region
        $region37: #{tpu_custom_call.1} parent=11 // pred_check
          %p271 = pneg %p194
        $region38: #{tpu_custom_call.1} parent=11 // pred_check_branch
          %273 = sbr.rel (%p271) target = $region40
        $region39: #{tpu_custom_call.1} parent=11 // pred_region
          _
        $region40: #{tpu_custom_call.1} parent=11 // pred_fallthru
          _
      $region12: #{tpu_custom_call.1} parent=5 // pred_fallthru
        _
      %p274 = scmp.lt.s32.totalorder %s21, 2
      // Predicated region
      $region41: #{tpu_custom_call.1} parent=5 // pred_check
        %p275 = pneg %p274
      $region42: #{tpu_custom_call.1} parent=5 // pred_check_branch
        %277 = sbr.rel (%p275) target = $region44
      $region43: #{tpu_custom_call.1} parent=5 // pred_region
        // Predicated region
        $region45: #{tpu_custom_call.1} parent=43 // pred_check
          %p278 = pneg %p41
        $region46: #{tpu_custom_call.1} parent=43 // pred_check_branch
          %280 = sbr.rel (%p278) target = $region48
        $region47: #{tpu_custom_call.1} parent=43 // pred_region
          %s281 = sand.u32 %s31, 1
          %s282 = scalar_lea.sflag [#allocation4], %s281
          %s283 = sand.u32 %s31, 1
          %s284 = smul.addr %s283, 16
          %s285 = scalar_lea.vmem [#allocation3], %s284
          %s287 = ssub.s32 256, 256
          %288 = vsyncadd %s282, %s287
          %s289 = smul.addr %s21, 4
          %s290 = smul.addr %s289, 64
          %s291 = scalar_lea.hbm %s0, %s290
          %s293 = sshll.u32 %s285, 4
          %s294 = int_to_ptr.vmem [resolvable:$true] %s293
          %296 = dma.hbm_to_vmem [thread:$0]  %s291, 256, %s294, %s282
        $region48: #{tpu_custom_call.1} parent=43 // pred_fallthru
          _
      $region44: #{tpu_custom_call.1} parent=5 // pred_fallthru
        _
      %p297 = scmp.le.s32.totalorder 1, %s21
      %p298 = scmp.lt.s32.totalorder %s21, 3
      %p299 = pnand %p297, %p298
      %p300 = pneg %p299
      // Predicated region
      $region49: #{tpu_custom_call.1} parent=5 // pred_check
        _
      $region50: #{tpu_custom_call.1} parent=5 // pred_check_branch
        %302 = sbr.rel (%p299) target = $region52
      $region51: #{tpu_custom_call.1} parent=5 // pred_region
        %s303 = ssub.s32 %s21, 1
        %s304 = sand.u32 %s34, 1
        %s305 = scalar_lea.sflag [#allocation4], %s304
        %s306 = sand.u32 %s34, 1
        %s307 = smul.addr %s306, 16
        %s308 = scalar_lea.vmem [#allocation3], %s307
        // Predicated region
        $region53: #{tpu_custom_call.1} parent=51 // pred_check
          %p309 = pneg %p47
        $region54: #{tpu_custom_call.1} parent=51 // pred_check_branch
          %311 = sbr.rel (%p309) target = $region56
        $region55: #{tpu_custom_call.1} parent=51 // pred_region
          %312 = dma.done %s305, 256
        $region56: #{tpu_custom_call.1} parent=51 // pred_fallthru
          _
        // Predicated region
        $region57: #{tpu_custom_call.1} parent=51 // pred_check
          %p313 = pneg %p68
        $region58: #{tpu_custom_call.1} parent=51 // pred_check_branch
          %315 = sbr.rel (%p313) target = $region60
        $region59: #{tpu_custom_call.1} parent=51 // pred_region
          %316 = dma.done [#allocation7], 2048
        $region60: #{tpu_custom_call.1} parent=51 // pred_fallthru
          _
        // Predicated region
        $region61: #{tpu_custom_call.1} parent=51 // pred_check
          %p317 = pneg %p173
        $region62: #{tpu_custom_call.1} parent=51 // pred_check_branch
          %319 = sbr.rel (%p317) target = $region64
        $region63: #{tpu_custom_call.1} parent=51 // pred_region
          %320 = dma.done [#allocation7], 128
        $region64: #{tpu_custom_call.1} parent=51 // pred_fallthru
          _
        %s321 = sand.u32 %s34, 1
        %s322 = scalar_lea.sflag [#allocation4], %s321
        %s323 = sand.u32 %s34, 1
        %s324 = smul.addr %s323, 16
        %s325 = scalar_lea.vmem [#allocation3], %s324
        %p326 = pneg %p47
        %p327 = pneg %p44
        %p328 = pneg %p68
        %p329 = pneg %p65
        %p330 = pneg %p89
        %p331 = pneg %p86
        %p332 = pneg %p110
        %p333 = pneg %p107
        %p334 = pneg %p131
        %p335 = pneg %p128
        %p336 = pneg %p152
        %p337 = pneg %p149
        %p338 = pneg %p173
        %p339 = pneg %p170
        %p340 = pneg %p194
        %p341 = pneg %p191
        %p342 = pneg %p220
        %p343 = pneg %p217
        %s344 = sand.u32 %s207, 1
        %s345 = scalar_lea.sflag [#allocation5], %s344
        %s346 = sand.u32 %s207, 1
        %s347 = smul.addr %s346, 32
        %s348 = scalar_lea.vmem [#allocation9], %s347
        %v350 = vld [vmem:[%s3] sm:$0xff]
        %v351 = vld [vmem:[%s308] sm:$0xff]
        %v352 = vld [vmem:[%s308 + $0x8] sm:$0xff]
        %v353 = vunpack.c.l.bf16 %v351
        %v354 = vunpack.c.h.bf16 %v351
        %v355 = vunpack.c.l.bf16 %v352
        %v356 = vunpack.c.h.bf16 %v352
        %v357 = vld [vmem:[#allocation6] sm:$0xff]
        %v358 = vld [vmem:[#allocation6 + $0x8] sm:$0xff]
        %v359 = vld [vmem:[#allocation6 + $0x10] sm:$0xff]
        %v360 = vld [vmem:[#allocation6 + $0x18] sm:$0xff]
        %v361 = vld [vmem:[#allocation6 + $0x20] sm:$0xff]
        %v362 = vld [vmem:[#allocation6 + $0x28] sm:$0xff]
        %v363 = vld [vmem:[#allocation6 + $0x30] sm:$0xff]
        %v364 = vld [vmem:[#allocation6 + $0x38] sm:$0xff]
        %v365 = vld [vmem:[#allocation6 + $0x40] sm:$0xff]
        %v366 = vld [vmem:[#allocation6 + $0x48] sm:$0xff]
        %v367 = vld [vmem:[#allocation6 + $0x50] sm:$0xff]
        %v368 = vld [vmem:[#allocation6 + $0x58] sm:$0xff]
        %v369 = vld [vmem:[#allocation6 + $0x60] sm:$0x7]
        %v370 = vld [vmem:[#allocation6 + $0x68] sm:$0x7]
        %v371 = vld [vmem:[#allocation6 + $0x70] sm:$0x7]
        %v372 = vld [vmem:[#allocation6 + $0x78] sm:$0x7]
        %374 = vrot.lane.b32.xlu0 %v356, 73
        %v375 = vpop.permute.xlu0 %374
        %380 = vrot.lane.b32.xlu0 %v353, 73
        %v381 = vpop.permute.xlu0 %380
        %382 = vrot.lane.b32.xlu0 %v354, 73
        %v383 = vpop.permute.xlu0 %382
        %384 = vrot.lane.b32.xlu0 %v355, 73
        %v385 = vpop.permute.xlu0 %384
        %vm386 = vcmask 596992
        %v387 = vsel %vm386, %v381, %v383
        %v388 = vsel %vm386, %v383, %v385
        %v389 = vsel %vm386, %v385, %v375
        %v394 = vsel %vm386, %v375, %v381
        %v395 = vlaneseq
        %v396 = vshrl.u32 %v395, 7
        %v397 = vsub.s32 0, %v396
        %v398 = vrot.slane %v357, %v397
        %v399 = vlaneseq
        %v400 = vshrl.u32 %v399, 7
        %v401 = vsub.s32 0, %v400
        %v402 = vrot.slane %v358, %v401
        %v403 = vlaneseq
        %v404 = vshrl.u32 %v403, 7
        %v405 = vsub.s32 0, %v404
        %v406 = vrot.slane %v359, %v405
        %v407 = vlaneseq
        %v408 = vshrl.u32 %v407, 7
        %v409 = vsub.s32 0, %v408
        %v410 = vrot.slane %v360, %v409
        %v411 = vmul.f32 %v394, %v398
        %v412 = vmul.f32 %v387, %v402
        %v413 = vmul.f32 %v388, %v406
        %v414 = vmul.f32 %v389, %v410
        %415 = vst [vmem:[#allocation2] sm:$0xff] %v411
        %416 = vst [vmem:[#allocation2 + $0x8] sm:$0xff] %v412
        %417 = vst [vmem:[#allocation2 + $0x10] sm:$0xff] %v413
        %418 = vst [vmem:[#allocation2 + $0x18] sm:$0xff] %v414
        %419 = vrot.lane.b32.xlu0 %v356, 72
        %v420 = vpop.permute.xlu0 %419
        %422 = vrot.lane.b32.xlu0 %v353, 72
        %v423 = vpop.permute.xlu0 %422
        %424 = vrot.lane.b32.xlu0 %v354, 72
        %v425 = vpop.permute.xlu0 %424
        %426 = vrot.lane.b32.xlu0 %v355, 72
        %v427 = vpop.permute.xlu0 %426
        %vm428 = vcmask 588800
        %v429 = vsel %vm428, %v423, %v425
        %v430 = vsel %vm428, %v425, %v427
        %v431 = vsel %vm428, %v427, %v420
        %v436 = vsel %vm428, %v420, %v423
        %v437 = vlaneseq
        %v438 = vshrl.u32 %v437, 7
        %v439 = vsub.s32 1, %v438
        %v440 = vrot.slane %v357, %v439
        %v441 = vlaneseq
        %v442 = vshrl.u32 %v441, 7
        %v443 = vsub.s32 1, %v442
        %v444 = vrot.slane %v358, %v443
        %v445 = vlaneseq
        %v446 = vshrl.u32 %v445, 7
        %v447 = vsub.s32 1, %v446
        %v448 = vrot.slane %v359, %v447
        %v449 = vlaneseq
        %v450 = vshrl.u32 %v449, 7
        %v451 = vsub.s32 1, %v450
        %v452 = vrot.slane %v360, %v451
        %v453 = vmul.f32 %v436, %v440
        %v454 = vmul.f32 %v429, %v444
        %v455 = vmul.f32 %v430, %v448
        %v456 = vmul.f32 %v431, %v452
        %457 = vst [vmem:[#allocation2 + $0x20] sm:$0xff] %v453
        %458 = vst [vmem:[#allocation2 + $0x28] sm:$0xff] %v454
        %459 = vst [vmem:[#allocation2 + $0x30] sm:$0xff] %v455
        %460 = vst [vmem:[#allocation2 + $0x38] sm:$0xff] %v456
        %461 = vrot.lane.b32.xlu0 %v356, 71
        %v462 = vpop.permute.xlu0 %461
        %464 = vrot.lane.b32.xlu0 %v353, 71
        %v465 = vpop.permute.xlu0 %464
        %466 = vrot.lane.b32.xlu0 %v354, 71
        %v467 = vpop.permute.xlu0 %466
        %468 = vrot.lane.b32.xlu0 %v355, 71
        %v469 = vpop.permute.xlu0 %468
        %vm470 = vcmask 580608
        %v471 = vsel %vm470, %v465, %v467
        %v472 = vsel %vm470, %v467, %v469
        %v473 = vsel %vm470, %v469, %v462
        %v478 = vsel %vm470, %v462, %v465
        %v479 = vlaneseq
        %v480 = vshrl.u32 %v479, 7
        %v481 = vsub.s32 2, %v480
        %v482 = vrot.slane %v357, %v481
        %v483 = vlaneseq
        %v484 = vshrl.u32 %v483, 7
        %v485 = vsub.s32 2, %v484
        %v486 = vrot.slane %v358, %v485
        %v487 = vlaneseq
        %v488 = vshrl.u32 %v487, 7
        %v489 = vsub.s32 2, %v488
        %v490 = vrot.slane %v359, %v489
        %v491 = vlaneseq
        %v492 = vshrl.u32 %v491, 7
        %v493 = vsub.s32 2, %v492
        %v494 = vrot.slane %v360, %v493
        %v495 = vmul.f32 %v478, %v482
        %v496 = vmul.f32 %v471, %v486
        %v497 = vmul.f32 %v472, %v490
        %v498 = vmul.f32 %v473, %v494
        %499 = vst [vmem:[#allocation2 + $0x40] sm:$0xff] %v495
        %500 = vst [vmem:[#allocation2 + $0x48] sm:$0xff] %v496
        %501 = vst [vmem:[#allocation2 + $0x50] sm:$0xff] %v497
        %502 = vst [vmem:[#allocation2 + $0x58] sm:$0xff] %v498
        %503 = vrot.lane.b32.xlu0 %v356, 65
        %v504 = vpop.permute.xlu0 %503
        %506 = vrot.lane.b32.xlu0 %v353, 65
        %v507 = vpop.permute.xlu0 %506
        %508 = vrot.lane.b32.xlu0 %v354, 65
        %v509 = vpop.permute.xlu0 %508
        %510 = vrot.lane.b32.xlu0 %v355, 65
        %v511 = vpop.permute.xlu0 %510
        %vm512 = vcmask 531456
        %v513 = vsel %vm512, %v507, %v509
        %v514 = vsel %vm512, %v509, %v511
        %v515 = vsel %vm512, %v511, %v504
        %v520 = vsel %vm512, %v504, %v507
        %v521 = vlaneseq
        %v522 = vshrl.u32 %v521, 7
        %v523 = vsub.s32 3, %v522
        %v524 = vrot.slane %v357, %v523
        %v525 = vlaneseq
        %v526 = vshrl.u32 %v525, 7
        %v527 = vsub.s32 3, %v526
        %v528 = vrot.slane %v358, %v527
        %v529 = vlaneseq
        %v530 = vshrl.u32 %v529, 7
        %v531 = vsub.s32 3, %v530
        %v532 = vrot.slane %v359, %v531
        %v533 = vlaneseq
        %v534 = vshrl.u32 %v533, 7
        %v535 = vsub.s32 3, %v534
        %v536 = vrot.slane %v360, %v535
        %v537 = vmul.f32 %v520, %v524
        %v538 = vmul.f32 %v513, %v528
        %v539 = vmul.f32 %v514, %v532
        %v540 = vmul.f32 %v515, %v536
        %541 = vst [vmem:[#allocation2 + $0x60] sm:$0xff] %v537
        %542 = vst [vmem:[#allocation2 + $0x68] sm:$0xff] %v538
        %543 = vst [vmem:[#allocation2 + $0x70] sm:$0xff] %v539
        %544 = vst [vmem:[#allocation2 + $0x78] sm:$0xff] %v540
        %545 = vrot.lane.b32.xlu0 %v356, 64
        %v546 = vpop.permute.xlu0 %545
        %548 = vrot.lane.b32.xlu0 %v353, 64
        %v549 = vpop.permute.xlu0 %548
        %550 = vrot.lane.b32.xlu0 %v354, 64
        %v551 = vpop.permute.xlu0 %550
        %552 = vrot.lane.b32.xlu0 %v355, 64
        %v553 = vpop.permute.xlu0 %552
        %vm554 = vcmask 523264
        %v555 = vsel %vm554, %v549, %v551
        %v556 = vsel %vm554, %v551, %v553
        %v557 = vsel %vm554, %v553, %v546
        %v562 = vsel %vm554, %v546, %v549
        %v563 = vlaneseq
        %v564 = vshrl.u32 %v563, 7
        %v565 = vsub.s32 4, %v564
        %v566 = vrot.slane %v357, %v565
        %v567 = vlaneseq
        %v568 = vshrl.u32 %v567, 7
        %v569 = vsub.s32 4, %v568
        %v570 = vrot.slane %v358, %v569
        %v571 = vlaneseq
        %v572 = vshrl.u32 %v571, 7
        %v573 = vsub.s32 4, %v572
        %v574 = vrot.slane %v359, %v573
        %v575 = vlaneseq
        %v576 = vshrl.u32 %v575, 7
        %v577 = vsub.s32 4, %v576
        %v578 = vrot.slane %v360, %v577
        %v579 = vmul.f32 %v562, %v566
        %v580 = vmul.f32 %v555, %v570
        %v581 = vmul.f32 %v556, %v574
        %v582 = vmul.f32 %v557, %v578
        %583 = vst [vmem:[#allocation2 + $0x80] sm:$0xff] %v579
        %584 = vst [vmem:[#allocation2 + $0x88] sm:$0xff] %v580
        %585 = vst [vmem:[#allocation2 + $0x90] sm:$0xff] %v581
        %586 = vst [vmem:[#allocation2 + $0x98] sm:$0xff] %v582
        %587 = vrot.lane.b32.xlu0 %v356, 63
        %v588 = vpop.permute.xlu0 %587
        %590 = vrot.lane.b32.xlu0 %v353, 63
        %v591 = vpop.permute.xlu0 %590
        %592 = vrot.lane.b32.xlu0 %v354, 63
        %v593 = vpop.permute.xlu0 %592
        %594 = vrot.lane.b32.xlu0 %v355, 63
        %v595 = vpop.permute.xlu0 %594
        %vm596 = vcmask 515072
        %v597 = vsel %vm596, %v591, %v593
        %v598 = vsel %vm596, %v593, %v595
        %v599 = vsel %vm596, %v595, %v588
        %v604 = vsel %vm596, %v588, %v591
        %v605 = vlaneseq
        %v606 = vshrl.u32 %v605, 7
        %v607 = vsub.s32 5, %v606
        %v608 = vrot.slane %v357, %v607
        %v609 = vlaneseq
        %v610 = vshrl.u32 %v609, 7
        %v611 = vsub.s32 5, %v610
        %v612 = vrot.slane %v358, %v611
        %v613 = vlaneseq
        %v614 = vshrl.u32 %v613, 7
        %v615 = vsub.s32 5, %v614
        %v616 = vrot.slane %v359, %v615
        %v617 = vlaneseq
        %v618 = vshrl.u32 %v617, 7
        %v619 = vsub.s32 5, %v618
        %v620 = vrot.slane %v360, %v619
        %v621 = vmul.f32 %v604, %v608
        %v622 = vmul.f32 %v597, %v612
        %v623 = vmul.f32 %v598, %v616
        %v624 = vmul.f32 %v599, %v620
        %625 = vst [vmem:[#allocation2 + $0xa0] sm:$0xff] %v621
        %626 = vst [vmem:[#allocation2 + $0xa8] sm:$0xff] %v622
        %627 = vst [vmem:[#allocation2 + $0xb0] sm:$0xff] %v623
        %628 = vst [vmem:[#allocation2 + $0xb8] sm:$0xff] %v624
        %629 = vrot.lane.b32.xlu0 %v356, 57
        %v630 = vpop.permute.xlu0 %629
        %632 = vrot.lane.b32.xlu0 %v353, 57
        %v633 = vpop.permute.xlu0 %632
        %634 = vrot.lane.b32.xlu0 %v354, 57
        %v635 = vpop.permute.xlu0 %634
        %636 = vrot.lane.b32.xlu0 %v355, 57
        %v637 = vpop.permute.xlu0 %636
        %vm638 = vcmask 465920
        %v639 = vsel %vm638, %v633, %v635
        %v640 = vsel %vm638, %v635, %v637
        %v641 = vsel %vm638, %v637, %v630
        %v646 = vsel %vm638, %v630, %v633
        %v647 = vlaneseq
        %v648 = vshrl.u32 %v647, 7
        %v649 = vsub.s32 6, %v648
        %v650 = vrot.slane %v357, %v649
        %v651 = vlaneseq
        %v652 = vshrl.u32 %v651, 7
        %v653 = vsub.s32 6, %v652
        %v654 = vrot.slane %v358, %v653
        %v655 = vlaneseq
        %v656 = vshrl.u32 %v655, 7
        %v657 = vsub.s32 6, %v656
        %v658 = vrot.slane %v359, %v657
        %v659 = vlaneseq
        %v660 = vshrl.u32 %v659, 7
        %v661 = vsub.s32 6, %v660
        %v662 = vrot.slane %v360, %v661
        %v663 = vmul.f32 %v646, %v650
        %v664 = vmul.f32 %v639, %v654
        %v665 = vmul.f32 %v640, %v658
        %v666 = vmul.f32 %v641, %v662
        %667 = vst [vmem:[#allocation2 + $0xc0] sm:$0xff] %v663
        %668 = vst [vmem:[#allocation2 + $0xc8] sm:$0xff] %v664
        %669 = vst [vmem:[#allocation2 + $0xd0] sm:$0xff] %v665
        %670 = vst [vmem:[#allocation2 + $0xd8] sm:$0xff] %v666
        %671 = vrot.lane.b32.xlu0 %v356, 56
        %v672 = vpop.permute.xlu0 %671
        %674 = vrot.lane.b32.xlu0 %v353, 56
        %v675 = vpop.permute.xlu0 %674
        %676 = vrot.lane.b32.xlu0 %v354, 56
        %v677 = vpop.permute.xlu0 %676
        %678 = vrot.lane.b32.xlu0 %v355, 56
        %v679 = vpop.permute.xlu0 %678
        %vm680 = vcmask 457728
        %v681 = vsel %vm680, %v675, %v677
        %v682 = vsel %vm680, %v677, %v679
        %v683 = vsel %vm680, %v679, %v672
        %v688 = vsel %vm680, %v672, %v675
        %v689 = vlaneseq
        %v690 = vshrl.u32 %v689, 7
        %v691 = vsub.s32 7, %v690
        %v692 = vrot.slane %v357, %v691
        %v693 = vlaneseq
        %v694 = vshrl.u32 %v693, 7
        %v695 = vsub.s32 7, %v694
        %v696 = vrot.slane %v358, %v695
        %v697 = vlaneseq
        %v698 = vshrl.u32 %v697, 7
        %v699 = vsub.s32 7, %v698
        %v700 = vrot.slane %v359, %v699
        %v701 = vlaneseq
        %v702 = vshrl.u32 %v701, 7
        %v703 = vsub.s32 7, %v702
        %v704 = vrot.slane %v360, %v703
        %v705 = vmul.f32 %v688, %v692
        %v706 = vmul.f32 %v681, %v696
        %v707 = vmul.f32 %v682, %v700
        %v708 = vmul.f32 %v683, %v704
        %709 = vst [vmem:[#allocation2 + $0xe0] sm:$0xff] %v705
        %710 = vst [vmem:[#allocation2 + $0xe8] sm:$0xff] %v706
        %711 = vst [vmem:[#allocation2 + $0xf0] sm:$0xff] %v707
        %712 = vst [vmem:[#allocation2 + $0xf8] sm:$0xff] %v708
        %713 = vrot.lane.b32.xlu0 %v356, 55
        %v714 = vpop.permute.xlu0 %713
        %716 = vrot.lane.b32.xlu0 %v353, 55
        %v717 = vpop.permute.xlu0 %716
        %718 = vrot.lane.b32.xlu0 %v354, 55
        %v719 = vpop.permute.xlu0 %718
        %720 = vrot.lane.b32.xlu0 %v355, 55
        %v721 = vpop.permute.xlu0 %720
        %vm722 = vcmask 449536
        %v723 = vsel %vm722, %v717, %v719
        %v724 = vsel %vm722, %v719, %v721
        %v725 = vsel %vm722, %v721, %v714
        %v730 = vsel %vm722, %v714, %v717
        %v731 = vlaneseq
        %v732 = vshrl.u32 %v731, 7
        %v733 = vsub.s32 0, %v732
        %v734 = vrot.slane %v361, %v733
        %v735 = vlaneseq
        %v736 = vshrl.u32 %v735, 7
        %v737 = vsub.s32 0, %v736
        %v738 = vrot.slane %v362, %v737
        %v739 = vlaneseq
        %v740 = vshrl.u32 %v739, 7
        %v741 = vsub.s32 0, %v740
        %v742 = vrot.slane %v363, %v741
        %v743 = vlaneseq
        %v744 = vshrl.u32 %v743, 7
        %v745 = vsub.s32 0, %v744
        %v746 = vrot.slane %v364, %v745
        %v747 = vmul.f32 %v730, %v734
        %v748 = vmul.f32 %v723, %v738
        %v749 = vmul.f32 %v724, %v742
        %v750 = vmul.f32 %v725, %v746
        %751 = vst [vmem:[#allocation2 + $0x100] sm:$0xff] %v747
        %752 = vst [vmem:[#allocation2 + $0x108] sm:$0xff] %v748
        %753 = vst [vmem:[#allocation2 + $0x110] sm:$0xff] %v749
        %754 = vst [vmem:[#allocation2 + $0x118] sm:$0xff] %v750
        %755 = vrot.lane.b32.xlu0 %v356, 9
        %v756 = vpop.permute.xlu0 %755
        %758 = vrot.lane.b32.xlu0 %v353, 9
        %v759 = vpop.permute.xlu0 %758
        %760 = vrot.lane.b32.xlu0 %v354, 9
        %v761 = vpop.permute.xlu0 %760
        %762 = vrot.lane.b32.xlu0 %v355, 9
        %v763 = vpop.permute.xlu0 %762
        %vm764 = vcmask 72704
        %v765 = vsel %vm764, %v759, %v761
        %v766 = vsel %vm764, %v761, %v763
        %v767 = vsel %vm764, %v763, %v756
        %v772 = vsel %vm764, %v756, %v759
        %v773 = vlaneseq
        %v774 = vshrl.u32 %v773, 7
        %v775 = vsub.s32 1, %v774
        %v776 = vrot.slane %v361, %v775
        %v777 = vlaneseq
        %v778 = vshrl.u32 %v777, 7
        %v779 = vsub.s32 1, %v778
        %v780 = vrot.slane %v362, %v779
        %v781 = vlaneseq
        %v782 = vshrl.u32 %v781, 7
        %v783 = vsub.s32 1, %v782
        %v784 = vrot.slane %v363, %v783
        %v785 = vlaneseq
        %v786 = vshrl.u32 %v785, 7
        %v787 = vsub.s32 1, %v786
        %v788 = vrot.slane %v364, %v787
        %v789 = vmul.f32 %v772, %v776
        %v790 = vmul.f32 %v765, %v780
        %v791 = vmul.f32 %v766, %v784
        %v792 = vmul.f32 %v767, %v788
        %793 = vst [vmem:[#allocation2 + $0x120] sm:$0xff] %v789
        %794 = vst [vmem:[#allocation2 + $0x128] sm:$0xff] %v790
        %795 = vst [vmem:[#allocation2 + $0x130] sm:$0xff] %v791
        %796 = vst [vmem:[#allocation2 + $0x138] sm:$0xff] %v792
        %797 = vrot.lane.b32.xlu0 %v356, 8
        %v798 = vpop.permute.xlu0 %797
        %800 = vrot.lane.b32.xlu0 %v353, 8
        %v801 = vpop.permute.xlu0 %800
        %802 = vrot.lane.b32.xlu0 %v354, 8
        %v803 = vpop.permute.xlu0 %802
        %804 = vrot.lane.b32.xlu0 %v355, 8
        %v805 = vpop.permute.xlu0 %804
        %vm806 = vcmask 64512
        %v807 = vsel %vm806, %v801, %v803
        %v808 = vsel %vm806, %v803, %v805
        %v809 = vsel %vm806, %v805, %v798
        %v814 = vsel %vm806, %v798, %v801
        %v815 = vlaneseq
        %v816 = vshrl.u32 %v815, 7
        %v817 = vsub.s32 2, %v816
        %v818 = vrot.slane %v361, %v817
        %v819 = vlaneseq
        %v820 = vshrl.u32 %v819, 7
        %v821 = vsub.s32 2, %v820
        %v822 = vrot.slane %v362, %v821
        %v823 = vlaneseq
        %v824 = vshrl.u32 %v823, 7
        %v825 = vsub.s32 2, %v824
        %v826 = vrot.slane %v363, %v825
        %v827 = vlaneseq
        %v828 = vshrl.u32 %v827, 7
        %v829 = vsub.s32 2, %v828
        %v830 = vrot.slane %v364, %v829
        %v831 = vmul.f32 %v814, %v818
        %v832 = vmul.f32 %v807, %v822
        %v833 = vmul.f32 %v808, %v826
        %v834 = vmul.f32 %v809, %v830
        %835 = vst [vmem:[#allocation2 + $0x140] sm:$0xff] %v831
        %836 = vst [vmem:[#allocation2 + $0x148] sm:$0xff] %v832
        %837 = vst [vmem:[#allocation2 + $0x150] sm:$0xff] %v833
        %838 = vst [vmem:[#allocation2 + $0x158] sm:$0xff] %v834
        %839 = vrot.lane.b32.xlu0 %v356, 7
        %v840 = vpop.permute.xlu0 %839
        %842 = vrot.lane.b32.xlu0 %v353, 7
        %v843 = vpop.permute.xlu0 %842
        %844 = vrot.lane.b32.xlu0 %v354, 7
        %v845 = vpop.permute.xlu0 %844
        %846 = vrot.lane.b32.xlu0 %v355, 7
        %v847 = vpop.permute.xlu0 %846
        %vm848 = vcmask 56320
        %v849 = vsel %vm848, %v843, %v845
        %v850 = vsel %vm848, %v845, %v847
        %v851 = vsel %vm848, %v847, %v840
        %v856 = vsel %vm848, %v840, %v843
        %v857 = vlaneseq
        %v858 = vshrl.u32 %v857, 7
        %v859 = vsub.s32 3, %v858
        %v860 = vrot.slane %v361, %v859
        %v861 = vlaneseq
        %v862 = vshrl.u32 %v861, 7
        %v863 = vsub.s32 3, %v862
        %v864 = vrot.slane %v362, %v863
        %v865 = vlaneseq
        %v866 = vshrl.u32 %v865, 7
        %v867 = vsub.s32 3, %v866
        %v868 = vrot.slane %v363, %v867
        %v869 = vlaneseq
        %v870 = vshrl.u32 %v869, 7
        %v871 = vsub.s32 3, %v870
        %v872 = vrot.slane %v364, %v871
        %v873 = vmul.f32 %v856, %v860
        %v874 = vmul.f32 %v849, %v864
        %v875 = vmul.f32 %v850, %v868
        %v876 = vmul.f32 %v851, %v872
        %877 = vst [vmem:[#allocation2 + $0x160] sm:$0xff] %v873
        %878 = vst [vmem:[#allocation2 + $0x168] sm:$0xff] %v874
        %879 = vst [vmem:[#allocation2 + $0x170] sm:$0xff] %v875
        %880 = vst [vmem:[#allocation2 + $0x178] sm:$0xff] %v876
        %881 = vrot.lane.b32.xlu0 %v356, 1
        %v882 = vpop.permute.xlu0 %881
        %884 = vrot.lane.b32.xlu0 %v353, 1
        %v885 = vpop.permute.xlu0 %884
        %886 = vrot.lane.b32.xlu0 %v354, 1
        %v887 = vpop.permute.xlu0 %886
        %888 = vrot.lane.b32.xlu0 %v355, 1
        %v889 = vpop.permute.xlu0 %888
        %vm890 = vcmask 7168
        %v891 = vsel %vm890, %v885, %v887
        %v892 = vsel %vm890, %v887, %v889
        %v893 = vsel %vm890, %v889, %v882
        %v898 = vsel %vm890, %v882, %v885
        %v899 = vlaneseq
        %v900 = vshrl.u32 %v899, 7
        %v901 = vsub.s32 4, %v900
        %v902 = vrot.slane %v361, %v901
        %v903 = vlaneseq
        %v904 = vshrl.u32 %v903, 7
        %v905 = vsub.s32 4, %v904
        %v906 = vrot.slane %v362, %v905
        %v907 = vlaneseq
        %v908 = vshrl.u32 %v907, 7
        %v909 = vsub.s32 4, %v908
        %v910 = vrot.slane %v363, %v909
        %v911 = vlaneseq
        %v912 = vshrl.u32 %v911, 7
        %v913 = vsub.s32 4, %v912
        %v914 = vrot.slane %v364, %v913
        %v915 = vmul.f32 %v898, %v902
        %v916 = vmul.f32 %v891, %v906
        %v917 = vmul.f32 %v892, %v910
        %v918 = vmul.f32 %v893, %v914
        %919 = vst [vmem:[#allocation2 + $0x180] sm:$0xff] %v915
        %920 = vst [vmem:[#allocation2 + $0x188] sm:$0xff] %v916
        %921 = vst [vmem:[#allocation2 + $0x190] sm:$0xff] %v917
        %922 = vst [vmem:[#allocation2 + $0x198] sm:$0xff] %v918
        %v923 = vlaneseq
        %v924 = vshrl.u32 %v923, 7
        %v925 = vsub.s32 5, %v924
        %v926 = vrot.slane %v361, %v925
        %v927 = vlaneseq
        %v928 = vshrl.u32 %v927, 7
        %v929 = vsub.s32 5, %v928
        %v930 = vrot.slane %v362, %v929
        %v931 = vlaneseq
        %v932 = vshrl.u32 %v931, 7
        %v933 = vsub.s32 5, %v932
        %v934 = vrot.slane %v363, %v933
        %v935 = vlaneseq
        %v936 = vshrl.u32 %v935, 7
        %v937 = vsub.s32 5, %v936
        %v938 = vrot.slane %v364, %v937
        %v939 = vmul.f32 %v353, %v926
        %v940 = vmul.f32 %v354, %v930
        %v941 = vmul.f32 %v355, %v934
        %v942 = vmul.f32 %v356, %v938
        %943 = vst [vmem:[#allocation2 + $0x1a0] sm:$0xff] %v939
        %944 = vst [vmem:[#allocation2 + $0x1a8] sm:$0xff] %v940
        %945 = vst [vmem:[#allocation2 + $0x1b0] sm:$0xff] %v941
        %946 = vst [vmem:[#allocation2 + $0x1b8] sm:$0xff] %v942
        %947 = vrot.lane.b32.xlu0 %v353, 127
        %v948 = vpop.permute.xlu0 %947
        %949 = vrot.lane.b32.xlu0 %v354, 127
        %v950 = vpop.permute.xlu0 %949
        %951 = vrot.lane.b32.xlu0 %v355, 127
        %v952 = vpop.permute.xlu0 %951
        %953 = vrot.lane.b32.xlu0 %v356, 127
        %v954 = vpop.permute.xlu0 %953
        %vm955 = vcmask 1039360
        %v956 = vsel %vm955, %v948, %v950
        %v957 = vsel %vm955, %v950, %v952
        %v958 = vsel %vm955, %v952, %v954
        %v964 = vsel %vm955, %v954, %v948
        %v965 = vlaneseq
        %v966 = vshrl.u32 %v965, 7
        %v967 = vsub.s32 6, %v966
        %v968 = vrot.slane %v361, %v967
        %v969 = vlaneseq
        %v970 = vshrl.u32 %v969, 7
        %v971 = vsub.s32 6, %v970
        %v972 = vrot.slane %v362, %v971
        %v973 = vlaneseq
        %v974 = vshrl.u32 %v973, 7
        %v975 = vsub.s32 6, %v974
        %v976 = vrot.slane %v363, %v975
        %v977 = vlaneseq
        %v978 = vshrl.u32 %v977, 7
        %v979 = vsub.s32 6, %v978
        %v980 = vrot.slane %v364, %v979
        %v981 = vmul.f32 %v956, %v968
        %v982 = vmul.f32 %v957, %v972
        %v983 = vmul.f32 %v958, %v976
        %v984 = vmul.f32 %v964, %v980
        %985 = vst [vmem:[#allocation2 + $0x1c0] sm:$0xff] %v981
        %986 = vst [vmem:[#allocation2 + $0x1c8] sm:$0xff] %v982
        %987 = vst [vmem:[#allocation2 + $0x1d0] sm:$0xff] %v983
        %988 = vst [vmem:[#allocation2 + $0x1d8] sm:$0xff] %v984
        %989 = vrot.lane.b32.xlu0 %v353, 121
        %v990 = vpop.permute.xlu0 %989
        %991 = vrot.lane.b32.xlu0 %v354, 121
        %v992 = vpop.permute.xlu0 %991
        %993 = vrot.lane.b32.xlu0 %v355, 121
        %v994 = vpop.permute.xlu0 %993
        %995 = vrot.lane.b32.xlu0 %v356, 121
        %v996 = vpop.permute.xlu0 %995
        %vm997 = vcmask 990208
        %v998 = vsel %vm997, %v990, %v992
        %v999 = vsel %vm997, %v992, %v994
        %v1000 = vsel %vm997, %v994, %v996
        %v1006 = vsel %vm997, %v996, %v990
        %v1007 = vlaneseq
        %v1008 = vshrl.u32 %v1007, 7
        %v1009 = vsub.s32 7, %v1008
        %v1010 = vrot.slane %v361, %v1009
        %v1011 = vlaneseq
        %v1012 = vshrl.u32 %v1011, 7
        %v1013 = vsub.s32 7, %v1012
        %v1014 = vrot.slane %v362, %v1013
        %v1015 = vlaneseq
        %v1016 = vshrl.u32 %v1015, 7
        %v1017 = vsub.s32 7, %v1016
        %v1018 = vrot.slane %v363, %v1017
        %v1019 = vlaneseq
        %v1020 = vshrl.u32 %v1019, 7
        %v1021 = vsub.s32 7, %v1020
        %v1022 = vrot.slane %v364, %v1021
        %v1023 = vmul.f32 %v998, %v1010
        %v1024 = vmul.f32 %v999, %v1014
        %v1025 = vmul.f32 %v1000, %v1018
        %v1026 = vmul.f32 %v1006, %v1022
        %1027 = vst [vmem:[#allocation2 + $0x1e0] sm:$0xff] %v1023
        %1028 = vst [vmem:[#allocation2 + $0x1e8] sm:$0xff] %v1024
        %1029 = vst [vmem:[#allocation2 + $0x1f0] sm:$0xff] %v1025
        %1030 = vst [vmem:[#allocation2 + $0x1f8] sm:$0xff] %v1026
        %1031 = vrot.lane.b32.xlu0 %v353, 120
        %v1032 = vpop.permute.xlu0 %1031
        %1033 = vrot.lane.b32.xlu0 %v354, 120
        %v1034 = vpop.permute.xlu0 %1033
        %1035 = vrot.lane.b32.xlu0 %v355, 120
        %v1036 = vpop.permute.xlu0 %1035
        %1037 = vrot.lane.b32.xlu0 %v356, 120
        %v1038 = vpop.permute.xlu0 %1037
        %vm1039 = vcmask 982016
        %v1040 = vsel %vm1039, %v1032, %v1034
        %v1041 = vsel %vm1039, %v1034, %v1036
        %v1042 = vsel %vm1039, %v1036, %v1038
        %v1048 = vsel %vm1039, %v1038, %v1032
        %v1049 = vlaneseq
        %v1050 = vshrl.u32 %v1049, 7
        %v1051 = vsub.s32 0, %v1050
        %v1052 = vrot.slane %v365, %v1051
        %v1053 = vlaneseq
        %v1054 = vshrl.u32 %v1053, 7
        %v1055 = vsub.s32 0, %v1054
        %v1056 = vrot.slane %v366, %v1055
        %v1057 = vlaneseq
        %v1058 = vshrl.u32 %v1057, 7
        %v1059 = vsub.s32 0, %v1058
        %v1060 = vrot.slane %v367, %v1059
        %v1061 = vlaneseq
        %v1062 = vshrl.u32 %v1061, 7
        %v1063 = vsub.s32 0, %v1062
        %v1064 = vrot.slane %v368, %v1063
        %v1065 = vmul.f32 %v1040, %v1052
        %v1066 = vmul.f32 %v1041, %v1056
        %v1067 = vmul.f32 %v1042, %v1060
        %v1068 = vmul.f32 %v1048, %v1064
        %1069 = vst [vmem:[#allocation2 + $0x200] sm:$0xff] %v1065
        %1070 = vst [vmem:[#allocation2 + $0x208] sm:$0xff] %v1066
        %1071 = vst [vmem:[#allocation2 + $0x210] sm:$0xff] %v1067
        %1072 = vst [vmem:[#allocation2 + $0x218] sm:$0xff] %v1068
        %1073 = vrot.lane.b32.xlu0 %v353, 119
        %v1074 = vpop.permute.xlu0 %1073
        %1075 = vrot.lane.b32.xlu0 %v354, 119
        %v1076 = vpop.permute.xlu0 %1075
        %1077 = vrot.lane.b32.xlu0 %v355, 119
        %v1078 = vpop.permute.xlu0 %1077
        %1079 = vrot.lane.b32.xlu0 %v356, 119
        %v1080 = vpop.permute.xlu0 %1079
        %vm1081 = vcmask 973824
        %v1082 = vsel %vm1081, %v1074, %v1076
        %v1083 = vsel %vm1081, %v1076, %v1078
        %v1084 = vsel %vm1081, %v1078, %v1080
        %v1090 = vsel %vm1081, %v1080, %v1074
        %v1091 = vlaneseq
        %v1092 = vshrl.u32 %v1091, 7
        %v1093 = vsub.s32 1, %v1092
        %v1094 = vrot.slane %v365, %v1093
        %v1095 = vlaneseq
        %v1096 = vshrl.u32 %v1095, 7
        %v1097 = vsub.s32 1, %v1096
        %v1098 = vrot.slane %v366, %v1097
        %v1099 = vlaneseq
        %v1100 = vshrl.u32 %v1099, 7
        %v1101 = vsub.s32 1, %v1100
        %v1102 = vrot.slane %v367, %v1101
        %v1103 = vlaneseq
        %v1104 = vshrl.u32 %v1103, 7
        %v1105 = vsub.s32 1, %v1104
        %v1106 = vrot.slane %v368, %v1105
        %v1107 = vmul.f32 %v1082, %v1094
        %v1108 = vmul.f32 %v1083, %v1098
        %v1109 = vmul.f32 %v1084, %v1102
        %v1110 = vmul.f32 %v1090, %v1106
        %1111 = vst [vmem:[#allocation2 + $0x220] sm:$0xff] %v1107
        %1112 = vst [vmem:[#allocation2 + $0x228] sm:$0xff] %v1108
        %1113 = vst [vmem:[#allocation2 + $0x230] sm:$0xff] %v1109
        %1114 = vst [vmem:[#allocation2 + $0x238] sm:$0xff] %v1110
        %v1115 = vlaneseq
        %v1116 = vshrl.u32 %v1115, 7
        %v1117 = vsub.s32 2, %v1116
        %v1118 = vrot.slane %v365, %v1117
        %v1119 = vlaneseq
        %v1120 = vshrl.u32 %v1119, 7
        %v1121 = vsub.s32 2, %v1120
        %v1122 = vrot.slane %v366, %v1121
        %v1123 = vlaneseq
        %v1124 = vshrl.u32 %v1123, 7
        %v1125 = vsub.s32 2, %v1124
        %v1126 = vrot.slane %v367, %v1125
        %v1127 = vlaneseq
        %v1128 = vshrl.u32 %v1127, 7
        %v1129 = vsub.s32 2, %v1128
        %v1130 = vrot.slane %v368, %v1129
        %v1131 = vmul.f32 %v387, %v1118
        %v1132 = vmul.f32 %v388, %v1122
        %v1133 = vmul.f32 %v389, %v1126
        %v1134 = vmul.f32 %v394, %v1130
        %1135 = vst [vmem:[#allocation2 + $0x240] sm:$0xff] %v1131
        %1136 = vst [vmem:[#allocation2 + $0x248] sm:$0xff] %v1132
        %1137 = vst [vmem:[#allocation2 + $0x250] sm:$0xff] %v1133
        %1138 = vst [vmem:[#allocation2 + $0x258] sm:$0xff] %v1134
        %v1139 = vlaneseq
        %v1140 = vshrl.u32 %v1139, 7
        %v1141 = vsub.s32 3, %v1140
        %v1142 = vrot.slane %v365, %v1141
        %v1143 = vlaneseq
        %v1144 = vshrl.u32 %v1143, 7
        %v1145 = vsub.s32 3, %v1144
        %v1146 = vrot.slane %v366, %v1145
        %v1147 = vlaneseq
        %v1148 = vshrl.u32 %v1147, 7
        %v1149 = vsub.s32 3, %v1148
        %v1150 = vrot.slane %v367, %v1149
        %v1151 = vlaneseq
        %v1152 = vshrl.u32 %v1151, 7
        %v1153 = vsub.s32 3, %v1152
        %v1154 = vrot.slane %v368, %v1153
        %v1155 = vmul.f32 %v429, %v1142
        %v1156 = vmul.f32 %v430, %v1146
        %v1157 = vmul.f32 %v431, %v1150
        %v1158 = vmul.f32 %v436, %v1154
        %1159 = vst [vmem:[#allocation2 + $0x260] sm:$0xff] %v1155
        %1160 = vst [vmem:[#allocation2 + $0x268] sm:$0xff] %v1156
        %1161 = vst [vmem:[#allocation2 + $0x270] sm:$0xff] %v1157
        %1162 = vst [vmem:[#allocation2 + $0x278] sm:$0xff] %v1158
        %v1163 = vlaneseq
        %v1164 = vshrl.u32 %v1163, 7
        %v1165 = vsub.s32 4, %v1164
        %v1166 = vrot.slane %v365, %v1165
        %v1167 = vlaneseq
        %v1168 = vshrl.u32 %v1167, 7
        %v1169 = vsub.s32 4, %v1168
        %v1170 = vrot.slane %v366, %v1169
        %v1171 = vlaneseq
        %v1172 = vshrl.u32 %v1171, 7
        %v1173 = vsub.s32 4, %v1172
        %v1174 = vrot.slane %v367, %v1173
        %v1175 = vlaneseq
        %v1176 = vshrl.u32 %v1175, 7
        %v1177 = vsub.s32 4, %v1176
        %v1178 = vrot.slane %v368, %v1177
        %v1179 = vmul.f32 %v471, %v1166
        %v1180 = vmul.f32 %v472, %v1170
        %v1181 = vmul.f32 %v473, %v1174
        %v1182 = vmul.f32 %v478, %v1178
        %1183 = vst [vmem:[#allocation2 + $0x280] sm:$0xff] %v1179
        %1184 = vst [vmem:[#allocation2 + $0x288] sm:$0xff] %v1180
        %1185 = vst [vmem:[#allocation2 + $0x290] sm:$0xff] %v1181
        %1186 = vst [vmem:[#allocation2 + $0x298] sm:$0xff] %v1182
        %v1187 = vlaneseq
        %v1188 = vshrl.u32 %v1187, 7
        %v1189 = vsub.s32 5, %v1188
        %v1190 = vrot.slane %v365, %v1189
        %v1191 = vlaneseq
        %v1192 = vshrl.u32 %v1191, 7
        %v1193 = vsub.s32 5, %v1192
        %v1194 = vrot.slane %v366, %v1193
        %v1195 = vlaneseq
        %v1196 = vshrl.u32 %v1195, 7
        %v1197 = vsub.s32 5, %v1196
        %v1198 = vrot.slane %v367, %v1197
        %v1199 = vlaneseq
        %v1200 = vshrl.u32 %v1199, 7
        %v1201 = vsub.s32 5, %v1200
        %v1202 = vrot.slane %v368, %v1201
        %v1203 = vmul.f32 %v513, %v1190
        %v1204 = vmul.f32 %v514, %v1194
        %v1205 = vmul.f32 %v515, %v1198
        %v1206 = vmul.f32 %v520, %v1202
        %1207 = vst [vmem:[#allocation2 + $0x2a0] sm:$0xff] %v1203
        %1208 = vst [vmem:[#allocation2 + $0x2a8] sm:$0xff] %v1204
        %1209 = vst [vmem:[#allocation2 + $0x2b0] sm:$0xff] %v1205
        %1210 = vst [vmem:[#allocation2 + $0x2b8] sm:$0xff] %v1206
        %v1211 = vlaneseq
        %v1212 = vshrl.u32 %v1211, 7
        %v1213 = vsub.s32 6, %v1212
        %v1214 = vrot.slane %v365, %v1213
        %v1215 = vlaneseq
        %v1216 = vshrl.u32 %v1215, 7
        %v1217 = vsub.s32 6, %v1216
        %v1218 = vrot.slane %v366, %v1217
        %v1219 = vlaneseq
        %v1220 = vshrl.u32 %v1219, 7
        %v1221 = vsub.s32 6, %v1220
        %v1222 = vrot.slane %v367, %v1221
        %v1223 = vlaneseq
        %v1224 = vshrl.u32 %v1223, 7
        %v1225 = vsub.s32 6, %v1224
        %v1226 = vrot.slane %v368, %v1225
        %v1227 = vmul.f32 %v555, %v1214
        %v1228 = vmul.f32 %v556, %v1218
        %v1229 = vmul.f32 %v557, %v1222
        %v1230 = vmul.f32 %v562, %v1226
        %1231 = vst [vmem:[#allocation2 + $0x2c0] sm:$0xff] %v1227
        %1232 = vst [vmem:[#allocation2 + $0x2c8] sm:$0xff] %v1228
        %1233 = vst [vmem:[#allocation2 + $0x2d0] sm:$0xff] %v1229
        %1234 = vst [vmem:[#allocation2 + $0x2d8] sm:$0xff] %v1230
        %v1235 = vlaneseq
        %v1236 = vshrl.u32 %v1235, 7
        %v1237 = vsub.s32 7, %v1236
        %v1238 = vrot.slane %v365, %v1237
        %v1239 = vlaneseq
        %v1240 = vshrl.u32 %v1239, 7
        %v1241 = vsub.s32 7, %v1240
        %v1242 = vrot.slane %v366, %v1241
        %v1243 = vlaneseq
        %v1244 = vshrl.u32 %v1243, 7
        %v1245 = vsub.s32 7, %v1244
        %v1246 = vrot.slane %v367, %v1245
        %v1247 = vlaneseq
        %v1248 = vshrl.u32 %v1247, 7
        %v1249 = vsub.s32 7, %v1248
        %v1250 = vrot.slane %v368, %v1249
        %v1251 = vmul.f32 %v597, %v1238
        %v1252 = vmul.f32 %v598, %v1242
        %v1253 = vmul.f32 %v599, %v1246
        %v1254 = vmul.f32 %v604, %v1250
        %1255 = vst [vmem:[#allocation2 + $0x2e0] sm:$0xff] %v1251
        %1256 = vst [vmem:[#allocation2 + $0x2e8] sm:$0xff] %v1252
        %1257 = vst [vmem:[#allocation2 + $0x2f0] sm:$0xff] %v1253
        %1258 = vst [vmem:[#allocation2 + $0x2f8] sm:$0xff] %v1254
        %v1259 = vlaneseq
        %v1260 = vshrl.u32 %v1259, 7
        %v1261 = vsub.s32 0, %v1260
        %v1262 = vrot.slane %v369, %v1261
        %v1263 = vlaneseq
        %v1264 = vshrl.u32 %v1263, 7
        %v1265 = vsub.s32 0, %v1264
        %v1266 = vrot.slane %v370, %v1265
        %v1267 = vlaneseq
        %v1268 = vshrl.u32 %v1267, 7
        %v1269 = vsub.s32 0, %v1268
        %v1270 = vrot.slane %v371, %v1269
        %v1271 = vlaneseq
        %v1272 = vshrl.u32 %v1271, 7
        %v1273 = vsub.s32 0, %v1272
        %v1274 = vrot.slane %v372, %v1273
        %v1275 = vmul.f32 %v639, %v1262
        %v1276 = vmul.f32 %v640, %v1266
        %v1277 = vmul.f32 %v641, %v1270
        %v1278 = vmul.f32 %v646, %v1274
        %1279 = vst [vmem:[#allocation2 + $0x300] sm:$0xff] %v1275
        %1280 = vst [vmem:[#allocation2 + $0x308] sm:$0xff] %v1276
        %1281 = vst [vmem:[#allocation2 + $0x310] sm:$0xff] %v1277
        %1282 = vst [vmem:[#allocation2 + $0x318] sm:$0xff] %v1278
        %v1283 = vlaneseq
        %v1284 = vshrl.u32 %v1283, 7
        %v1285 = vsub.s32 1, %v1284
        %v1286 = vrot.slane %v369, %v1285
        %v1287 = vlaneseq
        %v1288 = vshrl.u32 %v1287, 7
        %v1289 = vsub.s32 1, %v1288
        %v1290 = vrot.slane %v370, %v1289
        %v1291 = vlaneseq
        %v1292 = vshrl.u32 %v1291, 7
        %v1293 = vsub.s32 1, %v1292
        %v1294 = vrot.slane %v371, %v1293
        %v1295 = vlaneseq
        %v1296 = vshrl.u32 %v1295, 7
        %v1297 = vsub.s32 1, %v1296
        %v1298 = vrot.slane %v372, %v1297
        %v1299 = vmul.f32 %v681, %v1286
        %v1300 = vmul.f32 %v682, %v1290
        %v1301 = vmul.f32 %v683, %v1294
        %v1302 = vmul.f32 %v688, %v1298
        %1303 = vst [vmem:[#allocation2 + $0x320] sm:$0xff] %v1299
        %1304 = vst [vmem:[#allocation2 + $0x328] sm:$0xff] %v1300
        %1305 = vst [vmem:[#allocation2 + $0x330] sm:$0xff] %v1301
        %1306 = vst [vmem:[#allocation2 + $0x338] sm:$0xff] %v1302
        %v1307 = vlaneseq
        %v1308 = vshrl.u32 %v1307, 7
        %v1309 = vsub.s32 2, %v1308
        %v1310 = vrot.slane %v369, %v1309
        %v1311 = vlaneseq
        %v1312 = vshrl.u32 %v1311, 7
        %v1313 = vsub.s32 2, %v1312
        %v1314 = vrot.slane %v370, %v1313
        %v1315 = vlaneseq
        %v1316 = vshrl.u32 %v1315, 7
        %v1317 = vsub.s32 2, %v1316
        %v1318 = vrot.slane %v371, %v1317
        %v1319 = vlaneseq
        %v1320 = vshrl.u32 %v1319, 7
        %v1321 = vsub.s32 2, %v1320
        %v1322 = vrot.slane %v372, %v1321
        %v1323 = vmul.f32 %v723, %v1310
        %v1324 = vmul.f32 %v724, %v1314
        %v1325 = vmul.f32 %v725, %v1318
        %v1326 = vmul.f32 %v730, %v1322
        %1327 = vst [vmem:[#allocation2 + $0x340] sm:$0xff] %v1323
        %1328 = vst [vmem:[#allocation2 + $0x348] sm:$0xff] %v1324
        %1329 = vst [vmem:[#allocation2 + $0x350] sm:$0xff] %v1325
        %1330 = vst [vmem:[#allocation2 + $0x358] sm:$0xff] %v1326
        %v1331 = vld [vmem:[#allocation2] sm:$0xff]
        %v1332 = vld [vmem:[#allocation2 + $0x8] sm:$0xff]
        %v1333 = vld [vmem:[#allocation2 + $0x10] sm:$0xff]
        %v1334 = vld [vmem:[#allocation2 + $0x18] sm:$0xff]
        %v1335 = vld [vmem:[#allocation2 + $0x20] sm:$0xff]
        %v1336 = vld [vmem:[#allocation2 + $0x28] sm:$0xff]
        %v1337 = vld [vmem:[#allocation2 + $0x30] sm:$0xff]
        %v1338 = vld [vmem:[#allocation2 + $0x38] sm:$0xff]
        %v1339 = vld [vmem:[#allocation2 + $0x40] sm:$0xff]
        %v1340 = vld [vmem:[#allocation2 + $0x48] sm:$0xff]
        %v1341 = vld [vmem:[#allocation2 + $0x50] sm:$0xff]
        %v1342 = vld [vmem:[#allocation2 + $0x58] sm:$0xff]
        %v1343 = vld [vmem:[#allocation2 + $0x60] sm:$0xff]
        %v1344 = vld [vmem:[#allocation2 + $0x68] sm:$0xff]
        %v1345 = vld [vmem:[#allocation2 + $0x70] sm:$0xff]
        %v1346 = vld [vmem:[#allocation2 + $0x78] sm:$0xff]
        %v1347 = vld [vmem:[#allocation2 + $0x80] sm:$0xff]
        %v1348 = vld [vmem:[#allocation2 + $0x88] sm:$0xff]
        %v1349 = vld [vmem:[#allocation2 + $0x90] sm:$0xff]
        %v1350 = vld [vmem:[#allocation2 + $0x98] sm:$0xff]
        %v1351 = vld [vmem:[#allocation2 + $0xa0] sm:$0xff]
        %v1352 = vld [vmem:[#allocation2 + $0xa8] sm:$0xff]
        %v1353 = vld [vmem:[#allocation2 + $0xb0] sm:$0xff]
        %v1354 = vld [vmem:[#allocation2 + $0xb8] sm:$0xff]
        %v1355 = vld [vmem:[#allocation2 + $0xc0] sm:$0xff]
        %v1356 = vld [vmem:[#allocation2 + $0xc8] sm:$0xff]
        %v1357 = vld [vmem:[#allocation2 + $0xd0] sm:$0xff]
        %v1358 = vld [vmem:[#allocation2 + $0xd8] sm:$0xff]
        %v1359 = vld [vmem:[#allocation2 + $0xe0] sm:$0xff]
        %v1360 = vld [vmem:[#allocation2 + $0xe8] sm:$0xff]
        %v1361 = vld [vmem:[#allocation2 + $0xf0] sm:$0xff]
        %v1362 = vld [vmem:[#allocation2 + $0xf8] sm:$0xff]
        %v1363 = vld [vmem:[#allocation2 + $0x100] sm:$0xff]
        %v1364 = vld [vmem:[#allocation2 + $0x108] sm:$0xff]
        %v1365 = vld [vmem:[#allocation2 + $0x110] sm:$0xff]
        %v1366 = vld [vmem:[#allocation2 + $0x118] sm:$0xff]
        %v1367 = vld [vmem:[#allocation2 + $0x120] sm:$0xff]
        %v1368 = vld [vmem:[#allocation2 + $0x128] sm:$0xff]
        %v1369 = vld [vmem:[#allocation2 + $0x130] sm:$0xff]
        %v1370 = vld [vmem:[#allocation2 + $0x138] sm:$0xff]
        %v1371 = vld [vmem:[#allocation2 + $0x140] sm:$0xff]
        %v1372 = vld [vmem:[#allocation2 + $0x148] sm:$0xff]
        %v1373 = vld [vmem:[#allocation2 + $0x150] sm:$0xff]
        %v1374 = vld [vmem:[#allocation2 + $0x158] sm:$0xff]
        %v1375 = vld [vmem:[#allocation2 + $0x160] sm:$0xff]
        %v1376 = vld [vmem:[#allocation2 + $0x168] sm:$0xff]
        %v1377 = vld [vmem:[#allocation2 + $0x170] sm:$0xff]
        %v1378 = vld [vmem:[#allocation2 + $0x178] sm:$0xff]
        %v1379 = vld [vmem:[#allocation2 + $0x180] sm:$0xff]
        %v1380 = vld [vmem:[#allocation2 + $0x188] sm:$0xff]
        %v1381 = vld [vmem:[#allocation2 + $0x190] sm:$0xff]
        %v1382 = vld [vmem:[#allocation2 + $0x198] sm:$0xff]
        %v1383 = vld [vmem:[#allocation2 + $0x1a0] sm:$0xff]
        %v1384 = vld [vmem:[#allocation2 + $0x1a8] sm:$0xff]
        %v1385 = vld [vmem:[#allocation2 + $0x1b0] sm:$0xff]
        %v1386 = vld [vmem:[#allocation2 + $0x1b8] sm:$0xff]
        %v1387 = vld [vmem:[#allocation2 + $0x1c0] sm:$0xff]
        %v1388 = vld [vmem:[#allocation2 + $0x1c8] sm:$0xff]
        %v1389 = vld [vmem:[#allocation2 + $0x1d0] sm:$0xff]
        %v1390 = vld [vmem:[#allocation2 + $0x1d8] sm:$0xff]
        %v1391 = vld [vmem:[#allocation2 + $0x1e0] sm:$0xff]
        %v1392 = vld [vmem:[#allocation2 + $0x1e8] sm:$0xff]
        %v1393 = vld [vmem:[#allocation2 + $0x1f0] sm:$0xff]
        %v1394 = vld [vmem:[#allocation2 + $0x1f8] sm:$0xff]
        %v1395 = vld [vmem:[#allocation2 + $0x200] sm:$0xff]
        %v1396 = vld [vmem:[#allocation2 + $0x208] sm:$0xff]
        %v1397 = vld [vmem:[#allocation2 + $0x210] sm:$0xff]
        %v1398 = vld [vmem:[#allocation2 + $0x218] sm:$0xff]
        %v1399 = vld [vmem:[#allocation2 + $0x220] sm:$0xff]
        %v1400 = vld [vmem:[#allocation2 + $0x228] sm:$0xff]
        %v1401 = vld [vmem:[#allocation2 + $0x230] sm:$0xff]
        %v1402 = vld [vmem:[#allocation2 + $0x238] sm:$0xff]
        %v1403 = vld [vmem:[#allocation2 + $0x240] sm:$0xff]
        %v1404 = vld [vmem:[#allocation2 + $0x248] sm:$0xff]
        %v1405 = vld [vmem:[#allocation2 + $0x250] sm:$0xff]
        %v1406 = vld [vmem:[#allocation2 + $0x258] sm:$0xff]
        %v1407 = vld [vmem:[#allocation2 + $0x260] sm:$0xff]
        %v1408 = vld [vmem:[#allocation2 + $0x268] sm:$0xff]
        %v1409 = vld [vmem:[#allocation2 + $0x270] sm:$0xff]
        %v1410 = vld [vmem:[#allocation2 + $0x278] sm:$0xff]
        %v1411 = vld [vmem:[#allocation2 + $0x280] sm:$0xff]
        %v1412 = vld [vmem:[#allocation2 + $0x288] sm:$0xff]
        %v1413 = vld [vmem:[#allocation2 + $0x290] sm:$0xff]
        %v1414 = vld [vmem:[#allocation2 + $0x298] sm:$0xff]
        %v1415 = vld [vmem:[#allocation2 + $0x2a0] sm:$0xff]
        %v1416 = vld [vmem:[#allocation2 + $0x2a8] sm:$0xff]
        %v1417 = vld [vmem:[#allocation2 + $0x2b0] sm:$0xff]
        %v1418 = vld [vmem:[#allocation2 + $0x2b8] sm:$0xff]
        %v1419 = vld [vmem:[#allocation2 + $0x2c0] sm:$0xff]
        %v1420 = vld [vmem:[#allocation2 + $0x2c8] sm:$0xff]
        %v1421 = vld [vmem:[#allocation2 + $0x2d0] sm:$0xff]
        %v1422 = vld [vmem:[#allocation2 + $0x2d8] sm:$0xff]
        %v1423 = vld [vmem:[#allocation2 + $0x2e0] sm:$0xff]
        %v1424 = vld [vmem:[#allocation2 + $0x2e8] sm:$0xff]
        %v1425 = vld [vmem:[#allocation2 + $0x2f0] sm:$0xff]
        %v1426 = vld [vmem:[#allocation2 + $0x2f8] sm:$0xff]
        %v1427 = vld [vmem:[#allocation2 + $0x300] sm:$0xff]
        %v1428 = vld [vmem:[#allocation2 + $0x308] sm:$0xff]
        %v1429 = vld [vmem:[#allocation2 + $0x310] sm:$0xff]
        %v1430 = vld [vmem:[#allocation2 + $0x318] sm:$0xff]
        %v1431 = vld [vmem:[#allocation2 + $0x320] sm:$0xff]
        %v1432 = vld [vmem:[#allocation2 + $0x328] sm:$0xff]
        %v1433 = vld [vmem:[#allocation2 + $0x330] sm:$0xff]
        %v1434 = vld [vmem:[#allocation2 + $0x338] sm:$0xff]
        %v1435 = vld [vmem:[#allocation2 + $0x340] sm:$0xff]
        %v1436 = vld [vmem:[#allocation2 + $0x348] sm:$0xff]
        %v1437 = vld [vmem:[#allocation2 + $0x350] sm:$0xff]
        %v1438 = vld [vmem:[#allocation2 + $0x358] sm:$0xff]
        %v1439 = vpack.c.bf16 %v1335, %v1331
        %v1440 = vpack.c.bf16 %v1336, %v1332
        %v1441 = vpack.c.bf16 %v1337, %v1333
        %v1442 = vpack.c.bf16 %v1338, %v1334
        %v1443 = vpack.c.bf16 %v1343, %v1339
        %v1444 = vpack.c.bf16 %v1344, %v1340
        %v1445 = vpack.c.bf16 %v1345, %v1341
        %v1446 = vpack.c.bf16 %v1346, %v1342
        %v1447 = vpack.c.bf16 %v1351, %v1347
        %v1448 = vpack.c.bf16 %v1352, %v1348
        %v1449 = vpack.c.bf16 %v1353, %v1349
        %v1450 = vpack.c.bf16 %v1354, %v1350
        %v1451 = vpack.c.bf16 %v1359, %v1355
        %v1452 = vpack.c.bf16 %v1360, %v1356
        %v1453 = vpack.c.bf16 %v1361, %v1357
        %v1454 = vpack.c.bf16 %v1362, %v1358
        %v1455 = vpack.c.bf16 %v1367, %v1363
        %v1456 = vpack.c.bf16 %v1368, %v1364
        %v1457 = vpack.c.bf16 %v1369, %v1365
        %v1458 = vpack.c.bf16 %v1370, %v1366
        %v1459 = vpack.c.bf16 %v1375, %v1371
        %v1460 = vpack.c.bf16 %v1376, %v1372
        %v1461 = vpack.c.bf16 %v1377, %v1373
        %v1462 = vpack.c.bf16 %v1378, %v1374
        %v1463 = vpack.c.bf16 %v1383, %v1379
        %v1464 = vpack.c.bf16 %v1384, %v1380
        %v1465 = vpack.c.bf16 %v1385, %v1381
        %v1466 = vpack.c.bf16 %v1386, %v1382
        %v1467 = vpack.c.bf16 %v1391, %v1387
        %v1468 = vpack.c.bf16 %v1392, %v1388
        %v1469 = vpack.c.bf16 %v1393, %v1389
        %v1470 = vpack.c.bf16 %v1394, %v1390
        %v1471 = vpack.c.bf16 %v1399, %v1395
        %v1472 = vpack.c.bf16 %v1400, %v1396
        %v1473 = vpack.c.bf16 %v1401, %v1397
        %v1474 = vpack.c.bf16 %v1402, %v1398
        %v1475 = vpack.c.bf16 %v1407, %v1403
        %v1476 = vpack.c.bf16 %v1408, %v1404
        %v1477 = vpack.c.bf16 %v1409, %v1405
        %v1478 = vpack.c.bf16 %v1410, %v1406
        %v1479 = vpack.c.bf16 %v1415, %v1411
        %v1480 = vpack.c.bf16 %v1416, %v1412
        %v1481 = vpack.c.bf16 %v1417, %v1413
        %v1482 = vpack.c.bf16 %v1418, %v1414
        %v1483 = vpack.c.bf16 %v1423, %v1419
        %v1484 = vpack.c.bf16 %v1424, %v1420
        %v1485 = vpack.c.bf16 %v1425, %v1421
        %v1486 = vpack.c.bf16 %v1426, %v1422
        %v1487 = vpack.c.bf16 %v1431, %v1427
        %v1488 = vpack.c.bf16 %v1432, %v1428
        %v1489 = vpack.c.bf16 %v1433, %v1429
        %v1490 = vpack.c.bf16 %v1434, %v1430
        %v1491 = vpack.c.bf16 %v1435, %v1435
        %v1492 = vpack.c.bf16 %v1436, %v1436
        %v1493 = vpack.c.bf16 %v1437, %v1437
        %v1494 = vpack.c.bf16 %v1438, %v1438
        %v1495 = vld [vmem:[%s2] sm:$0xff]
        %1497 = vset.pattern.permute.xlu0 0
        %1498 = vperm.xlu0 %1497, %v350
        %v1499 = vpop.permute.xlu0 %1498
        %v1502 = vunpack.c.l.b16 %v1495
        %v1503 = vunpack.c.h.b16 %v1495
        %v1504 = vpack.c.b16 %v1502, %v1502
        %v1505 = vpack.c.b16 %v1503, %v1503
        %vm1507 = vcmask 719872
        %v1509 = vsel %vm1507, %v1505, 0
        %vm1511 = vcmask 1043456
        %v1513 = vsel %vm1511, %v1491, 0
        %v1516 = vsel %vm1511, %v1492, 0
        %v1519 = vsel %vm1511, %v1493, 0
        %v1522 = vsel %vm1511, %v1494, 0
        %1524 = vmatprep.subr.bf16.mxu0 %v1468
        %1525 = vmatpush1.bf16.msra.mxu0 %v1467
        %1526 = vmatprep.subr.bf16.mxu0 %v1464
        %1527 = vmatpush1.bf16.msra.mxu0 %v1463
        %1528 = vmatprep.subr.bf16.mxu0 %v1460
        %1529 = vmatpush1.bf16.msra.mxu0 %v1459
        %1530 = vmatprep.subr.bf16.mxu0 %v1456
        %1531 = vmatpush1.bf16.msra.mxu0 %v1455
        %1532 = vmatprep.subr.bf16.mxu0 %v1452
        %1533 = vmatpush1.bf16.msra.mxu0 %v1451
        %1534 = vmatprep.subr.bf16.mxu0 %v1448
        %1535 = vmatpush1.bf16.msra.mxu0 %v1447
        %1536 = vmatprep.subr.bf16.mxu0 %v1444
        %1537 = vmatpush1.bf16.msra.mxu0 %v1443
        %1538 = vmatprep.subr.bf16.mxu0 %v1440
        %1539 = vmatpush1.bf16.msra.mxu0 %v1439
        %1540 = vmatprep.subr.bf16.mxu0 0
        %1541 = vmatpush2.bf16.msra.mxu0 0
        %1542 = vmatprep.subr.bf16.mxu0 0
        %1543 = vmatpush2.bf16.msra.mxu0 0
        %1544 = vmatprep.subr.bf16.mxu0 %v1516
        %1545 = vmatpush2.bf16.msra.mxu0 %v1513
        %1546 = vmatprep.subr.bf16.mxu0 %v1488
        %1547 = vmatpush2.bf16.msra.mxu0 %v1487
        %1548 = vmatprep.subr.bf16.mxu0 %v1484
        %1549 = vmatpush2.bf16.msra.mxu0 %v1483
        %1550 = vmatprep.subr.bf16.mxu0 %v1480
        %1551 = vmatpush2.bf16.msra.mxu0 %v1479
        %1552 = vmatprep.subr.bf16.mxu0 %v1476
        %1553 = vmatpush2.bf16.msra.mxu0 %v1475
        %1554 = vmatprep.subr.bf16.mxu0 %v1472
        %1555 = vmatpush2.bf16.msra.mxu0 %v1471
        %1556 = vmatprep.mubr.bf16.mxu0 %v1509
        %1557 = vmatmul.mubr.bf16.gmra.mxu0 %v1504
        %v1558 = vpop.f32.mrf.mxu0
        %v1559 = vadd.f32 %v1499, %v1558
        %v1560 = vpop.f32.mrf.mxu0
        %v1561 = vadd.f32 %v1499, %v1560
        %v1562 = vpop.f32.mrf.mxu0
        %v1563 = vpop.f32.mrf.mxu0
        %1564 = vdwg.mxu0
        %1565 = vmatprep.subr.bf16.mxu0 %v1470
        %1566 = vmatpush1.bf16.msra.mxu0 %v1469
        %1567 = vmatprep.subr.bf16.mxu0 %v1466
        %1568 = vmatpush1.bf16.msra.mxu0 %v1465
        %1569 = vmatprep.subr.bf16.mxu0 %v1462
        %1570 = vmatpush1.bf16.msra.mxu0 %v1461
        %1571 = vmatprep.subr.bf16.mxu0 %v1458
        %1572 = vmatpush1.bf16.msra.mxu0 %v1457
        %1573 = vmatprep.subr.bf16.mxu0 %v1454
        %1574 = vmatpush1.bf16.msra.mxu0 %v1453
        %1575 = vmatprep.subr.bf16.mxu0 %v1450
        %1576 = vmatpush1.bf16.msra.mxu0 %v1449
        %1577 = vmatprep.subr.bf16.mxu0 %v1446
        %1578 = vmatpush1.bf16.msra.mxu0 %v1445
        %1579 = vmatprep.subr.bf16.mxu0 %v1442
        %1580 = vmatpush1.bf16.msra.mxu0 %v1441
        %1581 = vmatprep.subr.bf16.mxu0 0
        %1582 = vmatpush2.bf16.msra.mxu0 0
        %1583 = vmatprep.subr.bf16.mxu0 0
        %1584 = vmatpush2.bf16.msra.mxu0 0
        %1585 = vmatprep.subr.bf16.mxu0 %v1522
        %1586 = vmatpush2.bf16.msra.mxu0 %v1519
        %1587 = vmatprep.subr.bf16.mxu0 %v1490
        %1588 = vmatpush2.bf16.msra.mxu0 %v1489
        %1589 = vmatprep.subr.bf16.mxu0 %v1486
        %1590 = vmatpush2.bf16.msra.mxu0 %v1485
        %1591 = vmatprep.subr.bf16.mxu0 %v1482
        %1592 = vmatpush2.bf16.msra.mxu0 %v1481
        %1593 = vmatprep.subr.bf16.mxu0 %v1478
        %1594 = vmatpush2.bf16.msra.mxu0 %v1477
        %1595 = vmatprep.subr.bf16.mxu0 %v1474
        %1596 = vmatpush2.bf16.msra.mxu0 %v1473
        %1597 = vmatprep.mubr.bf16.mxu0 %v1509
        %1598 = vmatmul.mubr.bf16.gmra.mxu0 %v1504
        %v1599 = vpop.f32.mrf.mxu0
        %v1600 = vadd.f32 %v1499, %v1599
        %v1601 = vpop.f32.mrf.mxu0
        %v1602 = vadd.f32 %v1499, %v1601
        %v1603 = vpop.f32.mrf.mxu0
        %v1604 = vpop.f32.mrf.mxu0
        %1605 = vdwg.mxu0
        %v1606 = vadd.f32 %v1559, %v1561
        %v1607 = vadd.f32 %v1606, %v1600
        %v1608 = vadd.f32 %v1607, %v1602
        %1609 = vadd.xlane.f32.xlu0 %v1608
        %v1610 = vpop.xlane.xlu0 %1609
        %v1611 = vmul.f32 %v1610, 0.001953125
        %v1612 = vmul.f32 %v1559, %v1559
        %v1613 = vmul.f32 %v1561, %v1561
        %v1614 = vmul.f32 %v1600, %v1600
        %v1615 = vmul.f32 %v1602, %v1602
        %v1616 = vadd.f32 %v1612, %v1613
        %v1617 = vadd.f32 %v1616, %v1614
        %v1618 = vadd.f32 %v1617, %v1615
        %1619 = vadd.xlane.f32.xlu0 %v1618
        %v1620 = vpop.xlane.xlu0 %1619
        %v1621 = vmul.f32 %v1620, 0.001953125
        %v1622 = vmul.f32 %v1611, %v1611
        %v1623 = vsub.f32 %v1621, %v1622
        %v1624 = vsub.f32 %v1559, %v1611
        %v1625 = vsub.f32 %v1561, %v1611
        %v1626 = vsub.f32 %v1600, %v1611
        %v1627 = vsub.f32 %v1602, %v1611
        %v1628 = vadd.f32 %v1623, 1e-05
        %v1629 = vrsqrt.pop %v1628
        %v1630 = vmul.f32 %v1624, %v1629
        %v1631 = vmul.f32 %v1625, %v1629
        %v1632 = vmul.f32 %v1626, %v1629
        %v1633 = vmul.f32 %v1627, %v1629
        %vm1634 = vcmp.ge.f32.partialorder %v1630, 0.0
        %vm1635 = vcmp.ge.f32.partialorder %v1631, 0.0
        %vm1636 = vcmp.ge.f32.partialorder %v1632, 0.0
        %vm1637 = vcmp.ge.f32.partialorder %v1633, 0.0
        %v1638 = vmul.f32 %v1630, 0.01
        %v1639 = vmul.f32 %v1631, 0.01
        %v1640 = vmul.f32 %v1632, 0.01
        %v1641 = vmul.f32 %v1633, 0.01
        %v1642 = vsel %vm1634, %v1630, %v1638
        %v1643 = vsel %vm1635, %v1631, %v1639
        %v1644 = vsel %vm1636, %v1632, %v1640
        %v1645 = vsel %vm1637, %v1633, %v1641
        %v1646 = vadd.f32 %v1642, %v1643
        %v1647 = vadd.f32 %v1646, %v1644
        %v1648 = vadd.f32 %v1647, %v1645
        %1649 = vadd.xlane.f32.xlu0 %v1648
        %v1650 = vpop.xlane.xlu0 %1649
        %v1651 = vmul.f32 %v1650, 0.001953125
        %v1652 = vld [vmem:[%s4] sm:$0xff]
        %v1653 = vmul.f32 %v1651, %v1652
        %v1654 = vsel %vm806, %v1653, 0.0
        %v1655 = vrot.slane %v1654, 4
        %v1656 = vadd.f32 %v1654, %v1655
        %v1657 = vrot.slane %v1656, 2
        %v1658 = vadd.f32 %v1656, %v1657
        %v1659 = vrot.slane %v1658, 1
        %v1660 = vadd.f32 %v1658, %v1659
        %v1661 = vld [vmem:[%s5] sm:$0x1]
        %v1662 = vadd.f32 %v1660, %v1661
        %vm1663 = vcmp.ge.f32.partialorder %v1662, 0.0
        %v1664 = vmul.f32 %v1662, 0.01
        %v1665 = vsel %vm1663, %v1662, %v1664
        %v1666 = vld [vmem:[#allocation8] sm:$0xff]
        %v1667 = vld [vmem:[%s7] sm:$0x1]
        %v1669 = vsel %vm806, %v1665, 0
        %1671 = vmatprep.subr.mxu0 0.0
        %1672 = vmatpush1.msra.mxu0 0.0
        %1673 = vmatprep.subr.mxu0 0.0
        %1674 = vmatpush1.msra.mxu0 0.0
        %1675 = vmatprep.subr.mxu0 0.0
        %1676 = vmatpush1.msra.mxu0 0.0
        %1677 = vmatprep.subr.mxu0 0.0
        %1678 = vmatpush1.msra.mxu0 0.0
        %1679 = vmatprep.subr.mxu0 0.0
        %1680 = vmatpush1.msra.mxu0 0.0
        %1681 = vmatprep.subr.mxu0 0.0
        %1682 = vmatpush1.msra.mxu0 0.0
        %1683 = vmatprep.subr.mxu0 0.0
        %1684 = vmatpush1.msra.mxu0 0.0
        %1685 = vmatprep.subr.mxu0 0.0
        %1686 = vmatpush1.msra.mxu0 0.0
        %1687 = vmatprep.subr.mxu0 0.0
        %1688 = vmatpush1.msra.mxu0 0.0
        %1689 = vmatprep.subr.mxu0 0.0
        %1690 = vmatpush1.msra.mxu0 0.0
        %1691 = vmatprep.subr.mxu0 0.0
        %1692 = vmatpush1.msra.mxu0 0.0
        %1693 = vmatprep.subr.mxu0 0.0
        %1694 = vmatpush1.msra.mxu0 0.0
        %1695 = vmatprep.subr.mxu0 0.0
        %1696 = vmatpush1.msra.mxu0 0.0
        %1697 = vmatprep.subr.mxu0 0.0
        %1698 = vmatpush1.msra.mxu0 0.0
        %1699 = vmatprep.subr.mxu0 0.0
        %1700 = vmatpush1.msra.mxu0 0.0
        %1701 = vmatprep.subr.mxu0 0.0
        %1702 = vmatpush1.msra.mxu0 %v1666
        %1703 = vmatprep.subr.mxu0 0.0
        %1704 = vmatpush2.msra.mxu0 0.0
        %1705 = vmatprep.subr.mxu0 0.0
        %1706 = vmatpush2.msra.mxu0 0.0
        %1707 = vmatprep.subr.mxu0 0.0
        %1708 = vmatpush2.msra.mxu0 0.0
        %1709 = vmatprep.subr.mxu0 0.0
        %1710 = vmatpush2.msra.mxu0 0.0
        %1711 = vmatprep.subr.mxu0 0.0
        %1712 = vmatpush2.msra.mxu0 0.0
        %1713 = vmatprep.subr.mxu0 0.0
        %1714 = vmatpush2.msra.mxu0 0.0
        %1715 = vmatprep.subr.mxu0 0.0
        %1716 = vmatpush2.msra.mxu0 0.0
        %1717 = vmatprep.subr.mxu0 0.0
        %1718 = vmatpush2.msra.mxu0 0.0
        %1719 = vmatprep.subr.mxu0 0.0
        %1720 = vmatpush2.msra.mxu0 0.0
        %1721 = vmatprep.subr.mxu0 0.0
        %1722 = vmatpush2.msra.mxu0 0.0
        %1723 = vmatprep.subr.mxu0 0.0
        %1724 = vmatpush2.msra.mxu0 0.0
        %1725 = vmatprep.subr.mxu0 0.0
        %1726 = vmatpush2.msra.mxu0 0.0
        %1727 = vmatprep.subr.mxu0 0.0
        %1728 = vmatpush2.msra.mxu0 0.0
        %1729 = vmatprep.subr.mxu0 0.0
        %1730 = vmatpush2.msra.mxu0 0.0
        %1731 = vmatprep.subr.mxu0 0.0
        %1732 = vmatpush2.msra.mxu0 0.0
        %1733 = vmatprep.subr.mxu0 0.0
        %1734 = vmatpush2.msra.mxu0 0.0
        %1735 = vmatprep.mubr.f32.mxu0 0.0
        %1736 = vmatmul.mubr.f32.gmra.mxu0 %v1669
        %v1737 = vpop.f32.mrf.mxu0
        %v1738 = vadd.f32 %v1667, %v1737
        %v1739 = vpop.f32.mrf.mxu0
        %1740 = vdwg.mxu0
        %v1741 = vlaneseq
        %v1742 = vshrl.u32 %v1741, 7
        %v1743 = vlaneseq
        %v1744 = vand.u32 %v1743, 127
        %v1745 = vlaneseq
        %v1746 = vshrl.u32 %v1745, 7
        %v1747 = vsub.s32 0, %v1746
        %v1748 = vrot.slane %v1738, %v1747
        %vm1749 = vcmp.eq.s32.totalorder %v1742, %v1744
        %v1750 = vsel %vm1749, %v1748, 0.0
        %v1752 = vsel %vm806, %v1750, 0
        %1754 = vmatprep.subr.mxu0 0.0
        %1755 = vmatpush1.msra.mxu0 0.0
        %1756 = vmatprep.subr.mxu0 0.0
        %1757 = vmatpush1.msra.mxu0 0.0
        %1758 = vmatprep.subr.mxu0 0.0
        %1759 = vmatpush1.msra.mxu0 0.0
        %1760 = vmatprep.subr.mxu0 0.0
        %1761 = vmatpush1.msra.mxu0 0.0
        %1762 = vmatprep.subr.mxu0 0.0
        %1763 = vmatpush1.msra.mxu0 0.0
        %1764 = vmatprep.subr.mxu0 0.0
        %1765 = vmatpush1.msra.mxu0 0.0
        %1766 = vmatprep.subr.mxu0 0.0
        %1767 = vmatpush1.msra.mxu0 0.0
        %1768 = vmatprep.subr.mxu0 0.0
        %1769 = vmatpush1.msra.mxu0 0.0
        %1770 = vmatprep.subr.mxu0 0.0
        %1771 = vmatpush1.msra.mxu0 0.0
        %1772 = vmatprep.subr.mxu0 0.0
        %1773 = vmatpush1.msra.mxu0 0.0
        %1774 = vmatprep.subr.mxu0 0.0
        %1775 = vmatpush1.msra.mxu0 0.0
        %1776 = vmatprep.subr.mxu0 0.0
        %1777 = vmatpush1.msra.mxu0 0.0
        %1778 = vmatprep.subr.mxu0 0.0
        %1779 = vmatpush1.msra.mxu0 0.0
        %1780 = vmatprep.subr.mxu0 0.0
        %1781 = vmatpush1.msra.mxu0 0.0
        %1782 = vmatprep.subr.mxu0 0.0
        %1783 = vmatpush1.msra.mxu0 0.0
        %1784 = vmatprep.subr.mxu0 0.0
        %1785 = vmatpush1.msra.mxu0 1.0
        %1786 = vmatprep.subr.mxu0 0.0
        %1787 = vmatpush2.msra.mxu0 0.0
        %1788 = vmatprep.subr.mxu0 0.0
        %1789 = vmatpush2.msra.mxu0 0.0
        %1790 = vmatprep.subr.mxu0 0.0
        %1791 = vmatpush2.msra.mxu0 0.0
        %1792 = vmatprep.subr.mxu0 0.0
        %1793 = vmatpush2.msra.mxu0 0.0
        %1794 = vmatprep.subr.mxu0 0.0
        %1795 = vmatpush2.msra.mxu0 0.0
        %1796 = vmatprep.subr.mxu0 0.0
        %1797 = vmatpush2.msra.mxu0 0.0
        %1798 = vmatprep.subr.mxu0 0.0
        %1799 = vmatpush2.msra.mxu0 0.0
        %1800 = vmatprep.subr.mxu0 0.0
        %1801 = vmatpush2.msra.mxu0 0.0
        %1802 = vmatprep.subr.mxu0 0.0
        %1803 = vmatpush2.msra.mxu0 0.0
        %1804 = vmatprep.subr.mxu0 0.0
        %1805 = vmatpush2.msra.mxu0 0.0
        %1806 = vmatprep.subr.mxu0 0.0
        %1807 = vmatpush2.msra.mxu0 0.0
        %1808 = vmatprep.subr.mxu0 0.0
        %1809 = vmatpush2.msra.mxu0 0.0
        %1810 = vmatprep.subr.mxu0 0.0
        %1811 = vmatpush2.msra.mxu0 0.0
        %1812 = vmatprep.subr.mxu0 0.0
        %1813 = vmatpush2.msra.mxu0 0.0
        %1814 = vmatprep.subr.mxu0 0.0
        %1815 = vmatpush2.msra.mxu0 0.0
        %1816 = vmatprep.subr.mxu0 0.0
        %1817 = vmatpush2.msra.mxu0 0.0
        %1818 = vmatprep.mubr.f32.mxu0 0.0
        %1819 = vmatmul.mubr.f32.gmra.mxu0 %v1752
        %v1820 = vpop.f32.mrf.mxu0
        %v1821 = vadd.f32 0.0, %v1820
        %v1822 = vpop.f32.mrf.mxu0
        %1823 = vdwg.mxu0
        %1825 = vset.pattern.permute.xlu0 0
        %1826 = vperm.xlu0 %1825, %v1821
        %v1827 = vpop.permute.xlu0 %1826
        %vm1829 = vcmp.gt.f32.partialorder %v1827, %v1748
        %vm1830 = vcmp.eq.f32.partialorder %v1827, %v1748
        %vm1831 = vcmp.lt.s32.totalorder %v1742, %v1744
        %vm1832 = vmand %vm1830, %vm1831
        %vm1833 = vmor %vm1829, %vm1832
        %v1834 = vsel %vm1833, 1, 0
        %v1835 = vcvt.s32.f32 %v1834
        %v1836 = vsel %vm806, %v1835, 0.0
        %v1837 = vrot.slane %v1836, 4
        %v1838 = vadd.f32 %v1836, %v1837
        %v1839 = vrot.slane %v1838, 2
        %v1840 = vadd.f32 %v1838, %v1839
        %v1841 = vrot.slane %v1840, 1
        %v1842 = vadd.f32 %v1840, %v1841
        %v1843 = vcvt.s32.f32 %v1742
        %vm1844 = vcmp.eq.f32.partialorder %v1843, %v1842
        %v1845 = vsel %vm1844, 1, 0
        %v1846 = vcvt.s32.f32 %v1845
        %v1848 = vsel %vm806, %v1846, 0
        %1850 = vmatprep.subr.mxu0 0.0
        %1851 = vmatpush1.msra.mxu0 0.0
        %1852 = vmatprep.subr.mxu0 0.0
        %1853 = vmatpush1.msra.mxu0 0.0
        %1854 = vmatprep.subr.mxu0 0.0
        %1855 = vmatpush1.msra.mxu0 0.0
        %1856 = vmatprep.subr.mxu0 0.0
        %1857 = vmatpush1.msra.mxu0 0.0
        %1858 = vmatprep.subr.mxu0 0.0
        %1859 = vmatpush1.msra.mxu0 0.0
        %1860 = vmatprep.subr.mxu0 0.0
        %1861 = vmatpush1.msra.mxu0 0.0
        %1862 = vmatprep.subr.mxu0 0.0
        %1863 = vmatpush1.msra.mxu0 0.0
        %1864 = vmatprep.subr.mxu0 0.0
        %1865 = vmatpush1.msra.mxu0 0.0
        %1866 = vmatprep.subr.mxu0 0.0
        %1867 = vmatpush1.msra.mxu0 0.0
        %1868 = vmatprep.subr.mxu0 0.0
        %1869 = vmatpush1.msra.mxu0 0.0
        %1870 = vmatprep.subr.mxu0 0.0
        %1871 = vmatpush1.msra.mxu0 0.0
        %1872 = vmatprep.subr.mxu0 0.0
        %1873 = vmatpush1.msra.mxu0 0.0
        %1874 = vmatprep.subr.mxu0 0.0
        %1875 = vmatpush1.msra.mxu0 0.0
        %1876 = vmatprep.subr.mxu0 0.0
        %1877 = vmatpush1.msra.mxu0 0.0
        %1878 = vmatprep.subr.mxu0 0.0
        %1879 = vmatpush1.msra.mxu0 0.0
        %1880 = vmatprep.subr.mxu0 %v1643
        %1881 = vmatpush1.msra.mxu0 %v1642
        %1882 = vmatprep.subr.mxu0 0.0
        %1883 = vmatpush2.msra.mxu0 0.0
        %1884 = vmatprep.subr.mxu0 0.0
        %1885 = vmatpush2.msra.mxu0 0.0
        %1886 = vmatprep.subr.mxu0 0.0
        %1887 = vmatpush2.msra.mxu0 0.0
        %1888 = vmatprep.subr.mxu0 0.0
        %1889 = vmatpush2.msra.mxu0 0.0
        %1890 = vmatprep.subr.mxu0 0.0
        %1891 = vmatpush2.msra.mxu0 0.0
        %1892 = vmatprep.subr.mxu0 0.0
        %1893 = vmatpush2.msra.mxu0 0.0
        %1894 = vmatprep.subr.mxu0 0.0
        %1895 = vmatpush2.msra.mxu0 0.0
        %1896 = vmatprep.subr.mxu0 0.0
        %1897 = vmatpush2.msra.mxu0 0.0
        %1898 = vmatprep.subr.mxu0 0.0
        %1899 = vmatpush2.msra.mxu0 0.0
        %1900 = vmatprep.subr.mxu0 0.0
        %1901 = vmatpush2.msra.mxu0 0.0
        %1902 = vmatprep.subr.mxu0 0.0
        %1903 = vmatpush2.msra.mxu0 0.0
        %1904 = vmatprep.subr.mxu0 0.0
        %1905 = vmatpush2.msra.mxu0 0.0
        %1906 = vmatprep.subr.mxu0 0.0
        %1907 = vmatpush2.msra.mxu0 0.0
        %1908 = vmatprep.subr.mxu0 0.0
        %1909 = vmatpush2.msra.mxu0 0.0
        %1910 = vmatprep.subr.mxu0 0.0
        %1911 = vmatpush2.msra.mxu0 0.0
        %1912 = vmatprep.subr.mxu0 0.0
        %1913 = vmatpush2.msra.mxu0 0.0
        %1914 = vmatprep.mubr.f32.mxu0 0.0
        %1915 = vmatmul.mubr.f32.gmra.mxu0 %v1848
        %v1916 = vpop.f32.mrf.mxu0
        %v1917 = vadd.f32 0.0, %v1916
        %v1918 = vpop.f32.mrf.mxu0
        %v1919 = vadd.f32 0.0, %v1918
        %1920 = vdwg.mxu0
        %1921 = vmatprep.subr.mxu0 0.0
        %1922 = vmatpush1.msra.mxu0 0.0
        %1923 = vmatprep.subr.mxu0 0.0
        %1924 = vmatpush1.msra.mxu0 0.0
        %1925 = vmatprep.subr.mxu0 0.0
        %1926 = vmatpush1.msra.mxu0 0.0
        %1927 = vmatprep.subr.mxu0 0.0
        %1928 = vmatpush1.msra.mxu0 0.0
        %1929 = vmatprep.subr.mxu0 0.0
        %1930 = vmatpush1.msra.mxu0 0.0
        %1931 = vmatprep.subr.mxu0 0.0
        %1932 = vmatpush1.msra.mxu0 0.0
        %1933 = vmatprep.subr.mxu0 0.0
        %1934 = vmatpush1.msra.mxu0 0.0
        %1935 = vmatprep.subr.mxu0 0.0
        %1936 = vmatpush1.msra.mxu0 0.0
        %1937 = vmatprep.subr.mxu0 0.0
        %1938 = vmatpush1.msra.mxu0 0.0
        %1939 = vmatprep.subr.mxu0 0.0
        %1940 = vmatpush1.msra.mxu0 0.0
        %1941 = vmatprep.subr.mxu0 0.0
        %1942 = vmatpush1.msra.mxu0 0.0
        %1943 = vmatprep.subr.mxu0 0.0
        %1944 = vmatpush1.msra.mxu0 0.0
        %1945 = vmatprep.subr.mxu0 0.0
        %1946 = vmatpush1.msra.mxu0 0.0
        %1947 = vmatprep.subr.mxu0 0.0
        %1948 = vmatpush1.msra.mxu0 0.0
        %1949 = vmatprep.subr.mxu0 0.0
        %1950 = vmatpush1.msra.mxu0 0.0
        %1951 = vmatprep.subr.mxu0 %v1645
        %1952 = vmatpush1.msra.mxu0 %v1644
        %1953 = vmatprep.subr.mxu0 0.0
        %1954 = vmatpush2.msra.mxu0 0.0
        %1955 = vmatprep.subr.mxu0 0.0
        %1956 = vmatpush2.msra.mxu0 0.0
        %1957 = vmatprep.subr.mxu0 0.0
        %1958 = vmatpush2.msra.mxu0 0.0
        %1959 = vmatprep.subr.mxu0 0.0
        %1960 = vmatpush2.msra.mxu0 0.0
        %1961 = vmatprep.subr.mxu0 0.0
        %1962 = vmatpush2.msra.mxu0 0.0
        %1963 = vmatprep.subr.mxu0 0.0
        %1964 = vmatpush2.msra.mxu0 0.0
        %1965 = vmatprep.subr.mxu0 0.0
        %1966 = vmatpush2.msra.mxu0 0.0
        %1967 = vmatprep.subr.mxu0 0.0
        %1968 = vmatpush2.msra.mxu0 0.0
        %1969 = vmatprep.subr.mxu0 0.0
        %1970 = vmatpush2.msra.mxu0 0.0
        %1971 = vmatprep.subr.mxu0 0.0
        %1972 = vmatpush2.msra.mxu0 0.0
        %1973 = vmatprep.subr.mxu0 0.0
        %1974 = vmatpush2.msra.mxu0 0.0
        %1975 = vmatprep.subr.mxu0 0.0
        %1976 = vmatpush2.msra.mxu0 0.0
        %1977 = vmatprep.subr.mxu0 0.0
        %1978 = vmatpush2.msra.mxu0 0.0
        %1979 = vmatprep.subr.mxu0 0.0
        %1980 = vmatpush2.msra.mxu0 0.0
        %1981 = vmatprep.subr.mxu0 0.0
        %1982 = vmatpush2.msra.mxu0 0.0
        %1983 = vmatprep.subr.mxu0 0.0
        %1984 = vmatpush2.msra.mxu0 0.0
        %1985 = vmatprep.mubr.f32.mxu0 0.0
        %1986 = vmatmul.mubr.f32.gmra.mxu0 %v1848
        %v1987 = vpop.f32.mrf.mxu0
        %v1988 = vadd.f32 0.0, %v1987
        %v1989 = vpop.f32.mrf.mxu0
        %v1990 = vadd.f32 0.0, %v1989
        %1991 = vdwg.mxu0
        %v1992 = vadd.f32 %v1642, %v1917
        %v1993 = vadd.f32 %v1643, %v1919
        %v1994 = vadd.f32 %v1644, %v1988
        %v1995 = vadd.f32 %v1645, %v1990
        %v1996 = vadd.f32 %v1992, %v1993
        %v1997 = vadd.f32 %v1996, %v1994
        %v1998 = vadd.f32 %v1997, %v1995
        %1999 = vadd.xlane.f32.xlu0 %v1998
        %v2000 = vpop.xlane.xlu0 %1999
        %v2001 = vmul.f32 %v2000, 0.001953125
        %v2002 = vmul.f32 %v1992, %v1992
        %v2003 = vmul.f32 %v1993, %v1993
        %v2004 = vmul.f32 %v1994, %v1994
        %v2005 = vmul.f32 %v1995, %v1995
        %v2006 = vadd.f32 %v2002, %v2003
        %v2007 = vadd.f32 %v2006, %v2004
        %v2008 = vadd.f32 %v2007, %v2005
        %2009 = vadd.xlane.f32.xlu0 %v2008
        %v2010 = vpop.xlane.xlu0 %2009
        %v2011 = vmul.f32 %v2010, 0.001953125
        %v2012 = vmul.f32 %v2001, %v2001
        %v2013 = vsub.f32 %v2011, %v2012
        %v2014 = vsub.f32 %v1992, %v2001
        %v2015 = vsub.f32 %v1993, %v2001
        %v2016 = vsub.f32 %v1994, %v2001
        %v2017 = vsub.f32 %v1995, %v2001
        %v2018 = vadd.f32 %v2013, 1e-05
        %v2019 = vrsqrt.pop %v2018
        %v2020 = vmul.f32 %v2014, %v2019
        %v2021 = vmul.f32 %v2015, %v2019
        %v2022 = vmul.f32 %v2016, %v2019
        %v2023 = vmul.f32 %v2017, %v2019
        %2024 = vset.pattern.permute.xlu0 1
        %2025 = vperm.xlu0 %2024, %v350
        %v2026 = vpop.permute.xlu0 %2025
        %v2028 = vmul.f32 %v2020, %v2026
        %v2029 = vmul.f32 %v2021, %v2026
        %v2030 = vmul.f32 %v2022, %v2026
        %v2031 = vmul.f32 %v2023, %v2026
        %2032 = vset.pattern.permute.xlu0 2
        %2033 = vperm.xlu0 %2032, %v350
        %v2034 = vpop.permute.xlu0 %2033
        %v2036 = vadd.f32 %v2028, %v2034
        %v2037 = vadd.f32 %v2029, %v2034
        %v2038 = vadd.f32 %v2030, %v2034
        %v2039 = vadd.f32 %v2031, %v2034
        %vm2040 = vcmp.ge.f32.partialorder %v2036, 0.0
        %vm2041 = vcmp.ge.f32.partialorder %v2037, 0.0
        %vm2042 = vcmp.ge.f32.partialorder %v2038, 0.0
        %vm2043 = vcmp.ge.f32.partialorder %v2039, 0.0
        %v2044 = vmul.f32 %v2036, 0.01
        %v2045 = vmul.f32 %v2037, 0.01
        %v2046 = vmul.f32 %v2038, 0.01
        %v2047 = vmul.f32 %v2039, 0.01
        %v2048 = vsel %vm2040, %v2036, %v2044
        %v2049 = vsel %vm2041, %v2037, %v2045
        %v2050 = vsel %vm2042, %v2038, %v2046
        %v2051 = vsel %vm2043, %v2039, %v2047
        %2052 = vst [vmem:[%s348] sm:$0xff] %v2048
        %2053 = vst [vmem:[%s348 + $0x8] sm:$0xff] %v2049
        %2054 = vst [vmem:[%s348 + $0x10] sm:$0xff] %v2050
        %2055 = vst [vmem:[%s348 + $0x18] sm:$0xff] %v2051
        %s2056 = sand.u32 %s207, 1
        %s2057 = scalar_lea.sflag [#allocation5], %s2056
        %s2058 = sand.u32 %s207, 1
        %s2059 = smul.addr %s2058, 32
        %s2060 = scalar_lea.vmem [#allocation9], %s2059
        // Predicated region
        $region65: #{tpu_custom_call.1} parent=51 // pred_check
          %p2061 = pneg %p217
        $region66: #{tpu_custom_call.1} parent=51 // pred_check_branch
          %2063 = sbr.rel (%p2061) target = $region68
        $region67: #{tpu_custom_call.1} parent=51 // pred_region
          %s2065 = ssub.s32 512, 512
          %2066 = vsyncadd %s2057, %s2065
          %s2067 = smul.addr %s26, 4
          %s2068 = smul.addr %s2067, 128
          %s2069 = scalar_lea.hbm %s8, %s2068
          %s2071 = sshll.u32 %s2060, 4
          %s2072 = int_to_ptr.vmem [resolvable:$true] %s2071
          %2074 = dma.vmem_to_hbm [thread:$0]  %s2072, 512, %s2069, %s2057
        $region68: #{tpu_custom_call.1} parent=51 // pred_fallthru
          _
      $region52: #{tpu_custom_call.1} parent=5 // pred_fallthru
        _
      %p2075 = scmp.le.s32.totalorder 2, %s21
      // Predicated region
      $region69: #{tpu_custom_call.1} parent=5 // pred_check
        %p2076 = pneg %p2075
      $region70: #{tpu_custom_call.1} parent=5 // pred_check_branch
        %2078 = sbr.rel (%p2076) target = $region72
      $region71: #{tpu_custom_call.1} parent=5 // pred_region
        %s2079 = ssub.s32 %s21, 2
        // Predicated region
        $region73: #{tpu_custom_call.1} parent=71 // pred_check
          %p2080 = pneg %p223
        $region74: #{tpu_custom_call.1} parent=71 // pred_check_branch
          %2082 = sbr.rel (%p2080) target = $region76
        $region75: #{tpu_custom_call.1} parent=71 // pred_region
          %s2083 = sand.u32 %s208, 1
          %s2084 = scalar_lea.sflag [#allocation5], %s2083
          %s2085 = sand.u32 %s208, 1
          %s2086 = smul.addr %s2085, 32
          %s2087 = scalar_lea.vmem [#allocation9], %s2086
          %2088 = dma.done %s2084, 512
        $region76: #{tpu_custom_call.1} parent=71 // pred_fallthru
          _
      $region72: #{tpu_custom_call.1} parent=5 // pred_fallthru
        _
    $region6: #{tpu_custom_call.1} parent=1 // loop_footer
      %s25 = sadd.s32 1, %s21
    $region7: #{tpu_custom_call.1} parent=1 // loop_footer_branch
      %20 = sbr.rel target = $region3
    $region8: #{tpu_custom_call.1} parent=1 // loop_exit
      _
    %2089 = vsyncpa [#allocation4], 1
    %s2090 = scalar_lea.sflag [#allocation4], 1
    %2091 = vsyncpa %s2090, 1
    %2092 = vsyncpa [#allocation7], 1
    %2093 = vsyncpa [#allocation5], 1
    %s2094 = scalar_lea.sflag [#allocation5], 1
    %2095 = vsyncpa %s2094, 1

</llo_original>
